<compile_context>
chip_gen: v5e
topology: v5e:2x2
jax: 0.10.0
libtpu: 0.0.40
codegen_flags: <defaults>
</compile_context>

<pallas_src>
import functools

import jax
import jax.numpy as jnp
from jax import lax
from jax.experimental import pallas as pl
from jax.experimental.pallas import tpu as pltpu


# -----------------------------------------------------------------------------
# One bidirectional LSTM layer in a single Pallas invocation.
#
# Inputs:
#   xp_f, xp_b : (T, B, 4H)  precomputed  X @ W_ih + (b_ih + b_hh)  per direction
#   whh_f/whh_b: (H, 4H)     pre-transposed recurrent weights (gate order i,f,g,o)
# Output:
#   y          : (T, B, 2H)  forward hidden in [..., :H], backward in [..., H:]
# -----------------------------------------------------------------------------
def _bilstm_layer_kernel(xp_f_ref, xp_b_ref, whh_f_ref, whh_b_ref, y_ref):
    T, B, _ = xp_f_ref.shape
    H = whh_f_ref.shape[0]

    # Recurrent weights loaded into vregs once, reused every step.
    w_f = whh_f_ref[...]                      # (H, 4H)
    w_b = whh_b_ref[...]                      # (H, 4H)

    def step(xp_t, h, c, w_hh):
        # Single fused gate matmul: (B, H) @ (H, 4H) -> (B, 4H), f32 accumulate.
        gates = xp_t + jnp.dot(h, w_hh, preferred_element_type=jnp.float32)
        i_g = jax.nn.sigmoid(gates[:, 0 * H:1 * H])
        f_g = jax.nn.sigmoid(gates[:, 1 * H:2 * H])
        g_g = jnp.tanh(gates[:, 2 * H:3 * H])
        o_g = jax.nn.sigmoid(gates[:, 3 * H:4 * H])
        c_new = f_g * c + i_g * g_g
        h_new = o_g * jnp.tanh(c_new)
        return h_new, c_new

    def body(t, carry):
        h_f, c_f, h_b, c_b = carry
        # Forward direction, timestep t.
        h_f, c_f = step(xp_f_ref[t].astype(jnp.float32), h_f, c_f, w_f)
        y_ref[pl.ds(t, 1), :, 0:H] = h_f[None].astype(y_ref.dtype)
        # Backward direction, timestep T-1-t (time reversal is pure addressing).
        tb = T - 1 - t
        h_b, c_b = step(xp_b_ref[tb].astype(jnp.float32), h_b, c_b, w_b)
        y_ref[pl.ds(tb, 1), :, H:2 * H] = h_b[None].astype(y_ref.dtype)
        return h_f, c_f, h_b, c_b

    zeros = jnp.zeros((B, H), jnp.float32)
    lax.fori_loop(0, T, body, (zeros, zeros, zeros, zeros), unroll=(T <= 32))
    # TODO(synk): on v7x the two directions could run on the 2 TensorCores via a
    # size-2 "parallel" grid axis; kept single-core here for simplicity.


def bilstm_layer(x_tm, fwd, bwd):
    """One bidirectional LSTM layer. x_tm: (T, B, D_in) time-major -> (T, B, 2H)."""
    T, B, _ = x_tm.shape
    H = fwd["w_hh"].shape[0]          # static (array shape), safe under jit
    # Hoisted input projections: one large MXU-friendly matmul per direction,
    # bias (b_ih + b_hh) folded in so the serial kernel only does h @ W_hh.
    xp_f = jnp.einsum("tbd,dg->tbg", x_tm, fwd["w_ih"]) + fwd["b"]
    xp_b = jnp.einsum("tbd,dg->tbg", x_tm, bwd["w_ih"]) + bwd["b"]
    return pl.pallas_call(
        _bilstm_layer_kernel,
        out_shape=jax.ShapeDtypeStruct((T, B, 2 * H), jnp.float32),
    )(xp_f, xp_b, fwd["w_hh"], bwd["w_hh"])


# -----------------------------------------------------------------------------
# Parameter init (shapes match the PyTorch module; weights stored pre-transposed
# with gates fused on the last axis).
# -----------------------------------------------------------------------------
def init_params(key, n_vocab, embedding_dim, hidden_dim, n_layers,
                bidirectional=True):
    assert bidirectional, "forward pass implemented for the bidirectional default"
    H = hidden_dim
    n_dirs = 2
    keys = iter(jax.random.split(key, 3 + n_layers * n_dirs * 4))

    # nn.Embedding default: N(0, 1); padding_idx=0 row is zero.
    emb = jax.random.normal(next(keys), (n_vocab, embedding_dim), jnp.float32)
    emb = emb.at[0].set(0.0)

    def unif(k, shape, bound):
        return jax.random.uniform(k, shape, jnp.float32, -bound, bound)

    lstm_bound = 1.0 / float(H) ** 0.5
    layers = []
    for layer in range(n_layers):
        d_in = embedding_dim if layer == 0 else H * n_dirs
        dirs = {}
        for name in ("fwd", "bwd"):
            w_ih = unif(next(keys), (d_in, 4 * H), lstm_bound)   # (D_in, 4H)
            w_hh = unif(next(keys), (H, 4 * H), lstm_bound)      # (H, 4H)
            b_ih = unif(next(keys), (1, 4 * H), lstm_bound)
            b_hh = unif(next(keys), (1, 4 * H), lstm_bound)
            dirs[name] = dict(w_ih=w_ih, w_hh=w_hh, b=b_ih + b_hh)
        layers.append(dirs)

    cls_in = H * n_dirs
    cls_bound = 1.0 / float(cls_in) ** 0.5
    cls_w = unif(next(keys), (1, cls_in), cls_bound)
    cls_b = unif(next(keys), (1, 1), cls_bound)

    # NOTE: params contain only arrays (no python ints) so jit tracing is clean.
    return dict(embedding=emb, lstm=layers, cls_w=cls_w, cls_b=cls_b)


# -----------------------------------------------------------------------------
# Forward pass (matches SentenceClassifier.forward, eval mode).
# -----------------------------------------------------------------------------
@jax.jit
def sentence_classifier_forward(params, token_ids):
    # Embedding lookup (padding_idx handled by the zeroed row 0) — XLA gather.
    emb = jnp.take(params["embedding"], token_ids, axis=0)   # (B, T, E)
    x = jnp.transpose(emb, (1, 0, 2))                        # (T, B, E) time-major

    for layer in params["lstm"]:
        # TODO(synk): nn.LSTM inter-layer dropout is training-only; identity here.
        x = bilstm_layer(x, layer["fwd"], layer["bwd"])      # (T, B, 2H)

    last_output = x[-1]                                      # == output[:, -1, :]
    # TODO(synk): self.dropout is identity in eval mode; no RNG masking applied.
    # Classifier Linear(2H -> 1) kept in plain XLA (trivial matmul, avoids an
    # extra kernel launch + HBM round-trip).
    logits = jnp.dot(last_output, params["cls_w"].T) + params["cls_b"]  # (B, 1)
    return logits


if __name__ == "__main__":
    n_vocab = 100
    embedding_dim = 32
    hidden_dim = 32
    n_layers = 2
    batch = 2
    seq_len = 8

    key = jax.random.PRNGKey(0)
    k_param, k_tok = jax.random.split(key)

    params = init_params(k_param, n_vocab, embedding_dim, hidden_dim, n_layers,
                         bidirectional=True)
    token_ids = jax.random.randint(k_tok, (batch, seq_len), 0, n_vocab,
                                   dtype=jnp.int32)

    logits = sentence_classifier_forward(params, token_ids)
    jax.block_until_ready(logits)
    assert logits.shape == (batch, 1)
    print("KERNEL_OK")
</pallas_src>

<mosaic_0001>
module attributes {stable_mosaic.version = 11 : i64} {
  func.func @_bilstm_layer_kernel(%arg0: memref<8x2x128xf32, #tpu.memory_space<vmem>>, %arg1: memref<8x2x128xf32, #tpu.memory_space<vmem>>, %arg2: memref<32x128xf32, #tpu.memory_space<vmem>>, %arg3: memref<32x128xf32, #tpu.memory_space<vmem>>, %arg4: memref<8x2x64xf32, #tpu.memory_space<vmem>>) attributes {dimension_semantics = [], scalar_prefetch = 0 : i64, scratch_operands = 0 : i64, tpu.core_type = #tpu.core_type<tc>} {
    %c0 = arith.constant 0 : index
    %c0_0 = arith.constant 0 : index
    %0 = vector.load %arg2[%c0, %c0_0] : memref<32x128xf32, #tpu.memory_space<vmem>>, vector<32x128xf32>
    %c0_1 = arith.constant 0 : index
    %c0_2 = arith.constant 0 : index
    %1 = vector.load %arg3[%c0_1, %c0_2] : memref<32x128xf32, #tpu.memory_space<vmem>>, vector<32x128xf32>
    %cst = arith.constant 0.000000e+00 : f32
    %2 = vector.broadcast %cst : f32 to vector<2x32xf32>
    %c0_i32 = arith.constant 0 : i32
    %3 = arith.index_cast %c0_i32 : i32 to index
    %c0_3 = arith.constant 0 : index
    %c0_4 = arith.constant 0 : index
    %4 = vector.load %arg0[%3, %c0_3, %c0_4] : memref<8x2x128xf32, #tpu.memory_space<vmem>>, vector<1x2x128xf32>
    %5 = vector.shape_cast %4 : vector<1x2x128xf32> to vector<2x128xf32>
    %cst_5 = arith.constant dense<0.000000e+00> : vector<2x128xf32>
    %6 = tpu.matmul %2, %0, %cst_5 {dimension_numbers = #tpu.dot_dimension_numbers<[1], [0], [0], [1], [0, 0, 1, 1], [], []>} : vector<2x32xf32>, vector<32x128xf32>, vector<2x128xf32> -> vector<2x128xf32>
    %7 = arith.addf %5, %6 : vector<2x128xf32>
    %8 = vector.extract_strided_slice %7 {offsets = [0, 0], sizes = [2, 32], strides = [1, 1]} : vector<2x128xf32> to vector<2x32xf32>
    %9 = arith.negf %8 : vector<2x32xf32>
    %10 = math.exp %9 : vector<2x32xf32>
    %cst_6 = arith.constant 1.000000e+00 : f32
    %11 = vector.broadcast %cst_6 : f32 to vector<2x32xf32>
    %12 = arith.addf %11, %10 : vector<2x32xf32>
    %13 = arith.divf %11, %12 : vector<2x32xf32>
    %14 = vector.extract_strided_slice %7 {offsets = [0, 32], sizes = [2, 32], strides = [1, 1]} : vector<2x128xf32> to vector<2x32xf32>
    %15 = arith.negf %14 : vector<2x32xf32>
    %16 = math.exp %15 : vector<2x32xf32>
    %cst_7 = arith.constant 1.000000e+00 : f32
    %17 = vector.broadcast %cst_7 : f32 to vector<2x32xf32>
    %18 = arith.addf %17, %16 : vector<2x32xf32>
    %19 = arith.divf %17, %18 : vector<2x32xf32>
    %20 = vector.extract_strided_slice %7 {offsets = [0, 64], sizes = [2, 32], strides = [1, 1]} : vector<2x128xf32> to vector<2x32xf32>
    %21 = math.tanh %20 : vector<2x32xf32>
    %22 = vector.extract_strided_slice %7 {offsets = [0, 96], sizes = [2, 32], strides = [1, 1]} : vector<2x128xf32> to vector<2x32xf32>
    %23 = arith.negf %22 : vector<2x32xf32>
    %24 = math.exp %23 : vector<2x32xf32>
    %cst_8 = arith.constant 1.000000e+00 : f32
    %25 = vector.broadcast %cst_8 : f32 to vector<2x32xf32>
    %26 = arith.addf %25, %24 : vector<2x32xf32>
    %27 = arith.divf %25, %26 : vector<2x32xf32>
    %28 = arith.mulf %19, %2 : vector<2x32xf32>
    %29 = arith.mulf %13, %21 : vector<2x32xf32>
    %30 = arith.addf %28, %29 : vector<2x32xf32>
    %31 = math.tanh %30 : vector<2x32xf32>
    %32 = arith.mulf %27, %31 : vector<2x32xf32>
    %33 = vector.shape_cast %32 : vector<2x32xf32> to vector<1x2x32xf32>
    %34 = arith.index_cast %c0_i32 : i32 to index
    %c0_9 = arith.constant 0 : index
    %c0_10 = arith.constant 0 : index
    %35 = vector.load %arg4[%34, %c0_9, %c0_10] : memref<8x2x64xf32, #tpu.memory_space<vmem>>, vector<1x2x32xf32>
    tpu.vector_store %arg4[%34, %c0_9, %c0_10], %33 {strides = array<i32>} : memref<8x2x64xf32, #tpu.memory_space<vmem>>, vector<1x2x32xf32>,
    %c7_i32 = arith.constant 7 : i32
    %36 = arith.subi %c7_i32, %c0_i32 : i32
    %37 = arith.index_cast %36 : i32 to index
    %c0_11 = arith.constant 0 : index
    %c0_12 = arith.constant 0 : index
    %38 = vector.load %arg1[%37, %c0_11, %c0_12] : memref<8x2x128xf32, #tpu.memory_space<vmem>>, vector<1x2x128xf32>
    %39 = vector.shape_cast %38 : vector<1x2x128xf32> to vector<2x128xf32>
    %cst_13 = arith.constant dense<0.000000e+00> : vector<2x128xf32>
    %40 = tpu.matmul %2, %1, %cst_13 {dimension_numbers = #tpu.dot_dimension_numbers<[1], [0], [0], [1], [0, 0, 1, 1], [], []>} : vector<2x32xf32>, vector<32x128xf32>, vector<2x128xf32> -> vector<2x128xf32>
    %41 = arith.addf %39, %40 : vector<2x128xf32>
    %42 = vector.extract_strided_slice %41 {offsets = [0, 0], sizes = [2, 32], strides = [1, 1]} : vector<2x128xf32> to vector<2x32xf32>
    %43 = arith.negf %42 : vector<2x32xf32>
    %44 = math.exp %43 : vector<2x32xf32>
    %cst_14 = arith.constant 1.000000e+00 : f32
    %45 = vector.broadcast %cst_14 : f32 to vector<2x32xf32>
    %46 = arith.addf %45, %44 : vector<2x32xf32>
    %47 = arith.divf %45, %46 : vector<2x32xf32>
    %48 = vector.extract_strided_slice %41 {offsets = [0, 32], sizes = [2, 32], strides = [1, 1]} : vector<2x128xf32> to vector<2x32xf32>
    %49 = arith.negf %48 : vector<2x32xf32>
    %50 = math.exp %49 : vector<2x32xf32>
    %cst_15 = arith.constant 1.000000e+00 : f32
    %51 = vector.broadcast %cst_15 : f32 to vector<2x32xf32>
    %52 = arith.addf %51, %50 : vector<2x32xf32>
    %53 = arith.divf %51, %52 : vector<2x32xf32>
    %54 = vector.extract_strided_slice %41 {offsets = [0, 64], sizes = [2, 32], strides = [1, 1]} : vector<2x128xf32> to vector<2x32xf32>
    %55 = math.tanh %54 : vector<2x32xf32>
    %56 = vector.extract_strided_slice %41 {offsets = [0, 96], sizes = [2, 32], strides = [1, 1]} : vector<2x128xf32> to vector<2x32xf32>
    %57 = arith.negf %56 : vector<2x32xf32>
    %58 = math.exp %57 : vector<2x32xf32>
    %cst_16 = arith.constant 1.000000e+00 : f32
    %59 = vector.broadcast %cst_16 : f32 to vector<2x32xf32>
    %60 = arith.addf %59, %58 : vector<2x32xf32>
    %61 = arith.divf %59, %60 : vector<2x32xf32>
    %62 = arith.mulf %53, %2 : vector<2x32xf32>
    %63 = arith.mulf %47, %55 : vector<2x32xf32>
    %64 = arith.addf %62, %63 : vector<2x32xf32>
    %65 = math.tanh %64 : vector<2x32xf32>
    %66 = arith.mulf %61, %65 : vector<2x32xf32>
    %67 = vector.shape_cast %66 : vector<2x32xf32> to vector<1x2x32xf32>
    %68 = arith.index_cast %36 : i32 to index
    %c0_17 = arith.constant 0 : index
    %c32 = arith.constant 32 : index
    %69 = vector.load %arg4[%68, %c0_17, %c32] : memref<8x2x64xf32, #tpu.memory_space<vmem>>, vector<1x2x32xf32>
    tpu.vector_store %arg4[%68, %c0_17, %c32], %67 {strides = array<i32>} : memref<8x2x64xf32, #tpu.memory_space<vmem>>, vector<1x2x32xf32>,
    %c1_i32 = arith.constant 1 : i32
    %70 = arith.index_cast %c1_i32 : i32 to index
    %c0_18 = arith.constant 0 : index
    %c0_19 = arith.constant 0 : index
    %71 = vector.load %arg0[%70, %c0_18, %c0_19] : memref<8x2x128xf32, #tpu.memory_space<vmem>>, vector<1x2x128xf32>
    %72 = vector.shape_cast %71 : vector<1x2x128xf32> to vector<2x128xf32>
    %cst_20 = arith.constant dense<0.000000e+00> : vector<2x128xf32>
    %73 = tpu.matmul %32, %0, %cst_20 {dimension_numbers = #tpu.dot_dimension_numbers<[1], [0], [0], [1], [0, 0, 1, 1], [], []>} : vector<2x32xf32>, vector<32x128xf32>, vector<2x128xf32> -> vector<2x128xf32>
    %74 = arith.addf %72, %73 : vector<2x128xf32>
    %75 = vector.extract_strided_slice %74 {offsets = [0, 0], sizes = [2, 32], strides = [1, 1]} : vector<2x128xf32> to vector<2x32xf32>
    %76 = arith.negf %75 : vector<2x32xf32>
    %77 = math.exp %76 : vector<2x32xf32>
    %cst_21 = arith.constant 1.000000e+00 : f32
    %78 = vector.broadcast %cst_21 : f32 to vector<2x32xf32>
    %79 = arith.addf %78, %77 : vector<2x32xf32>
    %80 = arith.divf %78, %79 : vector<2x32xf32>
    %81 = vector.extract_strided_slice %74 {offsets = [0, 32], sizes = [2, 32], strides = [1, 1]} : vector<2x128xf32> to vector<2x32xf32>
    %82 = arith.negf %81 : vector<2x32xf32>
    %83 = math.exp %82 : vector<2x32xf32>
    %cst_22 = arith.constant 1.000000e+00 : f32
    %84 = vector.broadcast %cst_22 : f32 to vector<2x32xf32>
    %85 = arith.addf %84, %83 : vector<2x32xf32>
    %86 = arith.divf %84, %85 : vector<2x32xf32>
    %87 = vector.extract_strided_slice %74 {offsets = [0, 64], sizes = [2, 32], strides = [1, 1]} : vector<2x128xf32> to vector<2x32xf32>
    %88 = math.tanh %87 : vector<2x32xf32>
    %89 = vector.extract_strided_slice %74 {offsets = [0, 96], sizes = [2, 32], strides = [1, 1]} : vector<2x128xf32> to vector<2x32xf32>
    %90 = arith.negf %89 : vector<2x32xf32>
    %91 = math.exp %90 : vector<2x32xf32>
    %cst_23 = arith.constant 1.000000e+00 : f32
    %92 = vector.broadcast %cst_23 : f32 to vector<2x32xf32>
    %93 = arith.addf %92, %91 : vector<2x32xf32>
    %94 = arith.divf %92, %93 : vector<2x32xf32>
    %95 = arith.mulf %86, %30 : vector<2x32xf32>
    %96 = arith.mulf %80, %88 : vector<2x32xf32>
    %97 = arith.addf %95, %96 : vector<2x32xf32>
    %98 = math.tanh %97 : vector<2x32xf32>
    %99 = arith.mulf %94, %98 : vector<2x32xf32>
    %100 = vector.shape_cast %99 : vector<2x32xf32> to vector<1x2x32xf32>
    %101 = arith.index_cast %c1_i32 : i32 to index
    %c0_24 = arith.constant 0 : index
    %c0_25 = arith.constant 0 : index
    %102 = vector.load %arg4[%101, %c0_24, %c0_25] : memref<8x2x64xf32, #tpu.memory_space<vmem>>, vector<1x2x32xf32>
    tpu.vector_store %arg4[%101, %c0_24, %c0_25], %100 {strides = array<i32>} : memref<8x2x64xf32, #tpu.memory_space<vmem>>, vector<1x2x32xf32>,
    %c7_i32_26 = arith.constant 7 : i32
    %103 = arith.subi %c7_i32_26, %c1_i32 : i32
    %104 = arith.index_cast %103 : i32 to index
    %c0_27 = arith.constant 0 : index
    %c0_28 = arith.constant 0 : index
    %105 = vector.load %arg1[%104, %c0_27, %c0_28] : memref<8x2x128xf32, #tpu.memory_space<vmem>>, vector<1x2x128xf32>
    %106 = vector.shape_cast %105 : vector<1x2x128xf32> to vector<2x128xf32>
    %cst_29 = arith.constant dense<0.000000e+00> : vector<2x128xf32>
    %107 = tpu.matmul %66, %1, %cst_29 {dimension_numbers = #tpu.dot_dimension_numbers<[1], [0], [0], [1], [0, 0, 1, 1], [], []>} : vector<2x32xf32>, vector<32x128xf32>, vector<2x128xf32> -> vector<2x128xf32>
    %108 = arith.addf %106, %107 : vector<2x128xf32>
    %109 = vector.extract_strided_slice %108 {offsets = [0, 0], sizes = [2, 32], strides = [1, 1]} : vector<2x128xf32> to vector<2x32xf32>
    %110 = arith.negf %109 : vector<2x32xf32>
    %111 = math.exp %110 : vector<2x32xf32>
    %cst_30 = arith.constant 1.000000e+00 : f32
    %112 = vector.broadcast %cst_30 : f32 to vector<2x32xf32>
    %113 = arith.addf %112, %111 : vector<2x32xf32>
    %114 = arith.divf %112, %113 : vector<2x32xf32>
    %115 = vector.extract_strided_slice %108 {offsets = [0, 32], sizes = [2, 32], strides = [1, 1]} : vector<2x128xf32> to vector<2x32xf32>
    %116 = arith.negf %115 : vector<2x32xf32>
    %117 = math.exp %116 : vector<2x32xf32>
    %cst_31 = arith.constant 1.000000e+00 : f32
    %118 = vector.broadcast %cst_31 : f32 to vector<2x32xf32>
    %119 = arith.addf %118, %117 : vector<2x32xf32>
    %120 = arith.divf %118, %119 : vector<2x32xf32>
    %121 = vector.extract_strided_slice %108 {offsets = [0, 64], sizes = [2, 32], strides = [1, 1]} : vector<2x128xf32> to vector<2x32xf32>
    %122 = math.tanh %121 : vector<2x32xf32>
    %123 = vector.extract_strided_slice %108 {offsets = [0, 96], sizes = [2, 32], strides = [1, 1]} : vector<2x128xf32> to vector<2x32xf32>
    %124 = arith.negf %123 : vector<2x32xf32>
    %125 = math.exp %124 : vector<2x32xf32>
    %cst_32 = arith.constant 1.000000e+00 : f32
    %126 = vector.broadcast %cst_32 : f32 to vector<2x32xf32>
    %127 = arith.addf %126, %125 : vector<2x32xf32>
    %128 = arith.divf %126, %127 : vector<2x32xf32>
    %129 = arith.mulf %120, %64 : vector<2x32xf32>
    %130 = arith.mulf %114, %122 : vector<2x32xf32>
    %131 = arith.addf %129, %130 : vector<2x32xf32>
    %132 = math.tanh %131 : vector<2x32xf32>
    %133 = arith.mulf %128, %132 : vector<2x32xf32>
    %134 = vector.shape_cast %133 : vector<2x32xf32> to vector<1x2x32xf32>
    %135 = arith.index_cast %103 : i32 to index
    %c0_33 = arith.constant 0 : index
    %c32_34 = arith.constant 32 : index
    %136 = vector.load %arg4[%135, %c0_33, %c32_34] : memref<8x2x64xf32, #tpu.memory_space<vmem>>, vector<1x2x32xf32>
    tpu.vector_store %arg4[%135, %c0_33, %c32_34], %134 {strides = array<i32>} : memref<8x2x64xf32, #tpu.memory_space<vmem>>, vector<1x2x32xf32>,
    %c2_i32 = arith.constant 2 : i32
    %137 = arith.index_cast %c2_i32 : i32 to index
    %c0_35 = arith.constant 0 : index
    %c0_36 = arith.constant 0 : index
    %138 = vector.load %arg0[%137, %c0_35, %c0_36] : memref<8x2x128xf32, #tpu.memory_space<vmem>>, vector<1x2x128xf32>
    %139 = vector.shape_cast %138 : vector<1x2x128xf32> to vector<2x128xf32>
    %cst_37 = arith.constant dense<0.000000e+00> : vector<2x128xf32>
    %140 = tpu.matmul %99, %0, %cst_37 {dimension_numbers = #tpu.dot_dimension_numbers<[1], [0], [0], [1], [0, 0, 1, 1], [], []>} : vector<2x32xf32>, vector<32x128xf32>, vector<2x128xf32> -> vector<2x128xf32>
    %141 = arith.addf %139, %140 : vector<2x128xf32>
    %142 = vector.extract_strided_slice %141 {offsets = [0, 0], sizes = [2, 32], strides = [1, 1]} : vector<2x128xf32> to vector<2x32xf32>
    %143 = arith.negf %142 : vector<2x32xf32>
    %144 = math.exp %143 : vector<2x32xf32>
    %cst_38 = arith.constant 1.000000e+00 : f32
    %145 = vector.broadcast %cst_38 : f32 to vector<2x32xf32>
    %146 = arith.addf %145, %144 : vector<2x32xf32>
    %147 = arith.divf %145, %146 : vector<2x32xf32>
    %148 = vector.extract_strided_slice %141 {offsets = [0, 32], sizes = [2, 32], strides = [1, 1]} : vector<2x128xf32> to vector<2x32xf32>
    %149 = arith.negf %148 : vector<2x32xf32>
    %150 = math.exp %149 : vector<2x32xf32>
    %cst_39 = arith.constant 1.000000e+00 : f32
    %151 = vector.broadcast %cst_39 : f32 to vector<2x32xf32>
    %152 = arith.addf %151, %150 : vector<2x32xf32>
    %153 = arith.divf %151, %152 : vector<2x32xf32>
    %154 = vector.extract_strided_slice %141 {offsets = [0, 64], sizes = [2, 32], strides = [1, 1]} : vector<2x128xf32> to vector<2x32xf32>
    %155 = math.tanh %154 : vector<2x32xf32>
    %156 = vector.extract_strided_slice %141 {offsets = [0, 96], sizes = [2, 32], strides = [1, 1]} : vector<2x128xf32> to vector<2x32xf32>
    %157 = arith.negf %156 : vector<2x32xf32>
    %158 = math.exp %157 : vector<2x32xf32>
    %cst_40 = arith.constant 1.000000e+00 : f32
    %159 = vector.broadcast %cst_40 : f32 to vector<2x32xf32>
    %160 = arith.addf %159, %158 : vector<2x32xf32>
    %161 = arith.divf %159, %160 : vector<2x32xf32>
    %162 = arith.mulf %153, %97 : vector<2x32xf32>
    %163 = arith.mulf %147, %155 : vector<2x32xf32>
    %164 = arith.addf %162, %163 : vector<2x32xf32>
    %165 = math.tanh %164 : vector<2x32xf32>
    %166 = arith.mulf %161, %165 : vector<2x32xf32>
    %167 = vector.shape_cast %166 : vector<2x32xf32> to vector<1x2x32xf32>
    %168 = arith.index_cast %c2_i32 : i32 to index
    %c0_41 = arith.constant 0 : index
    %c0_42 = arith.constant 0 : index
    %169 = vector.load %arg4[%168, %c0_41, %c0_42] : memref<8x2x64xf32, #tpu.memory_space<vmem>>, vector<1x2x32xf32>
    tpu.vector_store %arg4[%168, %c0_41, %c0_42], %167 {strides = array<i32>} : memref<8x2x64xf32, #tpu.memory_space<vmem>>, vector<1x2x32xf32>,
    %c7_i32_43 = arith.constant 7 : i32
    %170 = arith.subi %c7_i32_43, %c2_i32 : i32
    %171 = arith.index_cast %170 : i32 to index
    %c0_44 = arith.constant 0 : index
    %c0_45 = arith.constant 0 : index
    %172 = vector.load %arg1[%171, %c0_44, %c0_45] : memref<8x2x128xf32, #tpu.memory_space<vmem>>, vector<1x2x128xf32>
    %173 = vector.shape_cast %172 : vector<1x2x128xf32> to vector<2x128xf32>
    %cst_46 = arith.constant dense<0.000000e+00> : vector<2x128xf32>
    %174 = tpu.matmul %133, %1, %cst_46 {dimension_numbers = #tpu.dot_dimension_numbers<[1], [0], [0], [1], [0, 0, 1, 1], [], []>} : vector<2x32xf32>, vector<32x128xf32>, vector<2x128xf32> -> vector<2x128xf32>
    %175 = arith.addf %173, %174 : vector<2x128xf32>
    %176 = vector.extract_strided_slice %175 {offsets = [0, 0], sizes = [2, 32], strides = [1, 1]} : vector<2x128xf32> to vector<2x32xf32>
    %177 = arith.negf %176 : vector<2x32xf32>
    %178 = math.exp %177 : vector<2x32xf32>
    %cst_47 = arith.constant 1.000000e+00 : f32
    %179 = vector.broadcast %cst_47 : f32 to vector<2x32xf32>
    %180 = arith.addf %179, %178 : vector<2x32xf32>
    %181 = arith.divf %179, %180 : vector<2x32xf32>
    %182 = vector.extract_strided_slice %175 {offsets = [0, 32], sizes = [2, 32], strides = [1, 1]} : vector<2x128xf32> to vector<2x32xf32>
    %183 = arith.negf %182 : vector<2x32xf32>
    %184 = math.exp %183 : vector<2x32xf32>
    %cst_48 = arith.constant 1.000000e+00 : f32
    %185 = vector.broadcast %cst_48 : f32 to vector<2x32xf32>
    %186 = arith.addf %185, %184 : vector<2x32xf32>
    %187 = arith.divf %185, %186 : vector<2x32xf32>
    %188 = vector.extract_strided_slice %175 {offsets = [0, 64], sizes = [2, 32], strides = [1, 1]} : vector<2x128xf32> to vector<2x32xf32>
    %189 = math.tanh %188 : vector<2x32xf32>
    %190 = vector.extract_strided_slice %175 {offsets = [0, 96], sizes = [2, 32], strides = [1, 1]} : vector<2x128xf32> to vector<2x32xf32>
    %191 = arith.negf %190 : vector<2x32xf32>
    %192 = math.exp %191 : vector<2x32xf32>
    %cst_49 = arith.constant 1.000000e+00 : f32
    %193 = vector.broadcast %cst_49 : f32 to vector<2x32xf32>
    %194 = arith.addf %193, %192 : vector<2x32xf32>
    %195 = arith.divf %193, %194 : vector<2x32xf32>
    %196 = arith.mulf %187, %131 : vector<2x32xf32>
    %197 = arith.mulf %181, %189 : vector<2x32xf32>
    %198 = arith.addf %196, %197 : vector<2x32xf32>
    %199 = math.tanh %198 : vector<2x32xf32>
    %200 = arith.mulf %195, %199 : vector<2x32xf32>
    %201 = vector.shape_cast %200 : vector<2x32xf32> to vector<1x2x32xf32>
    %202 = arith.index_cast %170 : i32 to index
    %c0_50 = arith.constant 0 : index
    %c32_51 = arith.constant 32 : index
    %203 = vector.load %arg4[%202, %c0_50, %c32_51] : memref<8x2x64xf32, #tpu.memory_space<vmem>>, vector<1x2x32xf32>
    tpu.vector_store %arg4[%202, %c0_50, %c32_51], %201 {strides = array<i32>} : memref<8x2x64xf32, #tpu.memory_space<vmem>>, vector<1x2x32xf32>,
    %c3_i32 = arith.constant 3 : i32
    %204 = arith.index_cast %c3_i32 : i32 to index
    %c0_52 = arith.constant 0 : index
    %c0_53 = arith.constant 0 : index
    %205 = vector.load %arg0[%204, %c0_52, %c0_53] : memref<8x2x128xf32, #tpu.memory_space<vmem>>, vector<1x2x128xf32>
    %206 = vector.shape_cast %205 : vector<1x2x128xf32> to vector<2x128xf32>
    %cst_54 = arith.constant dense<0.000000e+00> : vector<2x128xf32>
    %207 = tpu.matmul %166, %0, %cst_54 {dimension_numbers = #tpu.dot_dimension_numbers<[1], [0], [0], [1], [0, 0, 1, 1], [], []>} : vector<2x32xf32>, vector<32x128xf32>, vector<2x128xf32> -> vector<2x128xf32>
    %208 = arith.addf %206, %207 : vector<2x128xf32>
    %209 = vector.extract_strided_slice %208 {offsets = [0, 0], sizes = [2, 32], strides = [1, 1]} : vector<2x128xf32> to vector<2x32xf32>
    %210 = arith.negf %209 : vector<2x32xf32>
    %211 = math.exp %210 : vector<2x32xf32>
    %cst_55 = arith.constant 1.000000e+00 : f32
    %212 = vector.broadcast %cst_55 : f32 to vector<2x32xf32>
    %213 = arith.addf %212, %211 : vector<2x32xf32>
    %214 = arith.divf %212, %213 : vector<2x32xf32>
    %215 = vector.extract_strided_slice %208 {offsets = [0, 32], sizes = [2, 32], strides = [1, 1]} : vector<2x128xf32> to vector<2x32xf32>
    %216 = arith.negf %215 : vector<2x32xf32>
    %217 = math.exp %216 : vector<2x32xf32>
    %cst_56 = arith.constant 1.000000e+00 : f32
    %218 = vector.broadcast %cst_56 : f32 to vector<2x32xf32>
    %219 = arith.addf %218, %217 : vector<2x32xf32>
    %220 = arith.divf %218, %219 : vector<2x32xf32>
    %221 = vector.extract_strided_slice %208 {offsets = [0, 64], sizes = [2, 32], strides = [1, 1]} : vector<2x128xf32> to vector<2x32xf32>
    %222 = math.tanh %221 : vector<2x32xf32>
    %223 = vector.extract_strided_slice %208 {offsets = [0, 96], sizes = [2, 32], strides = [1, 1]} : vector<2x128xf32> to vector<2x32xf32>
    %224 = arith.negf %223 : vector<2x32xf32>
    %225 = math.exp %224 : vector<2x32xf32>
    %cst_57 = arith.constant 1.000000e+00 : f32
    %226 = vector.broadcast %cst_57 : f32 to vector<2x32xf32>
    %227 = arith.addf %226, %225 : vector<2x32xf32>
    %228 = arith.divf %226, %227 : vector<2x32xf32>
    %229 = arith.mulf %220, %164 : vector<2x32xf32>
    %230 = arith.mulf %214, %222 : vector<2x32xf32>
    %231 = arith.addf %229, %230 : vector<2x32xf32>
    %232 = math.tanh %231 : vector<2x32xf32>
    %233 = arith.mulf %228, %232 : vector<2x32xf32>
    %234 = vector.shape_cast %233 : vector<2x32xf32> to vector<1x2x32xf32>
    %235 = arith.index_cast %c3_i32 : i32 to index
    %c0_58 = arith.constant 0 : index
    %c0_59 = arith.constant 0 : index
    %236 = vector.load %arg4[%235, %c0_58, %c0_59] : memref<8x2x64xf32, #tpu.memory_space<vmem>>, vector<1x2x32xf32>
    tpu.vector_store %arg4[%235, %c0_58, %c0_59], %234 {strides = array<i32>} : memref<8x2x64xf32, #tpu.memory_space<vmem>>, vector<1x2x32xf32>,
    %c7_i32_60 = arith.constant 7 : i32
    %237 = arith.subi %c7_i32_60, %c3_i32 : i32
    %238 = arith.index_cast %237 : i32 to index
    %c0_61 = arith.constant 0 : index
    %c0_62 = arith.constant 0 : index
    %239 = vector.load %arg1[%238, %c0_61, %c0_62] : memref<8x2x128xf32, #tpu.memory_space<vmem>>, vector<1x2x128xf32>
    %240 = vector.shape_cast %239 : vector<1x2x128xf32> to vector<2x128xf32>
    %cst_63 = arith.constant dense<0.000000e+00> : vector<2x128xf32>
    %241 = tpu.matmul %200, %1, %cst_63 {dimension_numbers = #tpu.dot_dimension_numbers<[1], [0], [0], [1], [0, 0, 1, 1], [], []>} : vector<2x32xf32>, vector<32x128xf32>, vector<2x128xf32> -> vector<2x128xf32>
    %242 = arith.addf %240, %241 : vector<2x128xf32>
    %243 = vector.extract_strided_slice %242 {offsets = [0, 0], sizes = [2, 32], strides = [1, 1]} : vector<2x128xf32> to vector<2x32xf32>
    %244 = arith.negf %243 : vector<2x32xf32>
    %245 = math.exp %244 : vector<2x32xf32>
    %cst_64 = arith.constant 1.000000e+00 : f32
    %246 = vector.broadcast %cst_64 : f32 to vector<2x32xf32>
    %247 = arith.addf %246, %245 : vector<2x32xf32>
    %248 = arith.divf %246, %247 : vector<2x32xf32>
    %249 = vector.extract_strided_slice %242 {offsets = [0, 32], sizes = [2, 32], strides = [1, 1]} : vector<2x128xf32> to vector<2x32xf32>
    %250 = arith.negf %249 : vector<2x32xf32>
    %251 = math.exp %250 : vector<2x32xf32>
    %cst_65 = arith.constant 1.000000e+00 : f32
    %252 = vector.broadcast %cst_65 : f32 to vector<2x32xf32>
    %253 = arith.addf %252, %251 : vector<2x32xf32>
    %254 = arith.divf %252, %253 : vector<2x32xf32>
    %255 = vector.extract_strided_slice %242 {offsets = [0, 64], sizes = [2, 32], strides = [1, 1]} : vector<2x128xf32> to vector<2x32xf32>
    %256 = math.tanh %255 : vector<2x32xf32>
    %257 = vector.extract_strided_slice %242 {offsets = [0, 96], sizes = [2, 32], strides = [1, 1]} : vector<2x128xf32> to vector<2x32xf32>
    %258 = arith.negf %257 : vector<2x32xf32>
    %259 = math.exp %258 : vector<2x32xf32>
    %cst_66 = arith.constant 1.000000e+00 : f32
    %260 = vector.broadcast %cst_66 : f32 to vector<2x32xf32>
    %261 = arith.addf %260, %259 : vector<2x32xf32>
    %262 = arith.divf %260, %261 : vector<2x32xf32>
    %263 = arith.mulf %254, %198 : vector<2x32xf32>
    %264 = arith.mulf %248, %256 : vector<2x32xf32>
    %265 = arith.addf %263, %264 : vector<2x32xf32>
    %266 = math.tanh %265 : vector<2x32xf32>
    %267 = arith.mulf %262, %266 : vector<2x32xf32>
    %268 = vector.shape_cast %267 : vector<2x32xf32> to vector<1x2x32xf32>
    %269 = arith.index_cast %237 : i32 to index
    %c0_67 = arith.constant 0 : index
    %c32_68 = arith.constant 32 : index
    %270 = vector.load %arg4[%269, %c0_67, %c32_68] : memref<8x2x64xf32, #tpu.memory_space<vmem>>, vector<1x2x32xf32>
    tpu.vector_store %arg4[%269, %c0_67, %c32_68], %268 {strides = array<i32>} : memref<8x2x64xf32, #tpu.memory_space<vmem>>, vector<1x2x32xf32>,
    %c4_i32 = arith.constant 4 : i32
    %271 = arith.index_cast %c4_i32 : i32 to index
    %c0_69 = arith.constant 0 : index
    %c0_70 = arith.constant 0 : index
    %272 = vector.load %arg0[%271, %c0_69, %c0_70] : memref<8x2x128xf32, #tpu.memory_space<vmem>>, vector<1x2x128xf32>
    %273 = vector.shape_cast %272 : vector<1x2x128xf32> to vector<2x128xf32>
    %cst_71 = arith.constant dense<0.000000e+00> : vector<2x128xf32>
    %274 = tpu.matmul %233, %0, %cst_71 {dimension_numbers = #tpu.dot_dimension_numbers<[1], [0], [0], [1], [0, 0, 1, 1], [], []>} : vector<2x32xf32>, vector<32x128xf32>, vector<2x128xf32> -> vector<2x128xf32>
    %275 = arith.addf %273, %274 : vector<2x128xf32>
    %276 = vector.extract_strided_slice %275 {offsets = [0, 0], sizes = [2, 32], strides = [1, 1]} : vector<2x128xf32> to vector<2x32xf32>
    %277 = arith.negf %276 : vector<2x32xf32>
    %278 = math.exp %277 : vector<2x32xf32>
    %cst_72 = arith.constant 1.000000e+00 : f32
    %279 = vector.broadcast %cst_72 : f32 to vector<2x32xf32>
    %280 = arith.addf %279, %278 : vector<2x32xf32>
    %281 = arith.divf %279, %280 : vector<2x32xf32>
    %282 = vector.extract_strided_slice %275 {offsets = [0, 32], sizes = [2, 32], strides = [1, 1]} : vector<2x128xf32> to vector<2x32xf32>
    %283 = arith.negf %282 : vector<2x32xf32>
    %284 = math.exp %283 : vector<2x32xf32>
    %cst_73 = arith.constant 1.000000e+00 : f32
    %285 = vector.broadcast %cst_73 : f32 to vector<2x32xf32>
    %286 = arith.addf %285, %284 : vector<2x32xf32>
    %287 = arith.divf %285, %286 : vector<2x32xf32>
    %288 = vector.extract_strided_slice %275 {offsets = [0, 64], sizes = [2, 32], strides = [1, 1]} : vector<2x128xf32> to vector<2x32xf32>
    %289 = math.tanh %288 : vector<2x32xf32>
    %290 = vector.extract_strided_slice %275 {offsets = [0, 96], sizes = [2, 32], strides = [1, 1]} : vector<2x128xf32> to vector<2x32xf32>
    %291 = arith.negf %290 : vector<2x32xf32>
    %292 = math.exp %291 : vector<2x32xf32>
    %cst_74 = arith.constant 1.000000e+00 : f32
    %293 = vector.broadcast %cst_74 : f32 to vector<2x32xf32>
    %294 = arith.addf %293, %292 : vector<2x32xf32>
    %295 = arith.divf %293, %294 : vector<2x32xf32>
    %296 = arith.mulf %287, %231 : vector<2x32xf32>
    %297 = arith.mulf %281, %289 : vector<2x32xf32>
    %298 = arith.addf %296, %297 : vector<2x32xf32>
    %299 = math.tanh %298 : vector<2x32xf32>
    %300 = arith.mulf %295, %299 : vector<2x32xf32>
    %301 = vector.shape_cast %300 : vector<2x32xf32> to vector<1x2x32xf32>
    %302 = arith.index_cast %c4_i32 : i32 to index
    %c0_75 = arith.constant 0 : index
    %c0_76 = arith.constant 0 : index
    %303 = vector.load %arg4[%302, %c0_75, %c0_76] : memref<8x2x64xf32, #tpu.memory_space<vmem>>, vector<1x2x32xf32>
    tpu.vector_store %arg4[%302, %c0_75, %c0_76], %301 {strides = array<i32>} : memref<8x2x64xf32, #tpu.memory_space<vmem>>, vector<1x2x32xf32>,
    %c7_i32_77 = arith.constant 7 : i32
    %304 = arith.subi %c7_i32_77, %c4_i32 : i32
    %305 = arith.index_cast %304 : i32 to index
    %c0_78 = arith.constant 0 : index
    %c0_79 = arith.constant 0 : index
    %306 = vector.load %arg1[%305, %c0_78, %c0_79] : memref<8x2x128xf32, #tpu.memory_space<vmem>>, vector<1x2x128xf32>
    %307 = vector.shape_cast %306 : vector<1x2x128xf32> to vector<2x128xf32>
    %cst_80 = arith.constant dense<0.000000e+00> : vector<2x128xf32>
    %308 = tpu.matmul %267, %1, %cst_80 {dimension_numbers = #tpu.dot_dimension_numbers<[1], [0], [0], [1], [0, 0, 1, 1], [], []>} : vector<2x32xf32>, vector<32x128xf32>, vector<2x128xf32> -> vector<2x128xf32>
    %309 = arith.addf %307, %308 : vector<2x128xf32>
    %310 = vector.extract_strided_slice %309 {offsets = [0, 0], sizes = [2, 32], strides = [1, 1]} : vector<2x128xf32> to vector<2x32xf32>
    %311 = arith.negf %310 : vector<2x32xf32>
    %312 = math.exp %311 : vector<2x32xf32>
    %cst_81 = arith.constant 1.000000e+00 : f32
    %313 = vector.broadcast %cst_81 : f32 to vector<2x32xf32>
    %314 = arith.addf %313, %312 : vector<2x32xf32>
    %315 = arith.divf %313, %314 : vector<2x32xf32>
    %316 = vector.extract_strided_slice %309 {offsets = [0, 32], sizes = [2, 32], strides = [1, 1]} : vector<2x128xf32> to vector<2x32xf32>
    %317 = arith.negf %316 : vector<2x32xf32>
    %318 = math.exp %317 : vector<2x32xf32>
    %cst_82 = arith.constant 1.000000e+00 : f32
    %319 = vector.broadcast %cst_82 : f32 to vector<2x32xf32>
    %320 = arith.addf %319, %318 : vector<2x32xf32>
    %321 = arith.divf %319, %320 : vector<2x32xf32>
    %322 = vector.extract_strided_slice %309 {offsets = [0, 64], sizes = [2, 32], strides = [1, 1]} : vector<2x128xf32> to vector<2x32xf32>
    %323 = math.tanh %322 : vector<2x32xf32>
    %324 = vector.extract_strided_slice %309 {offsets = [0, 96], sizes = [2, 32], strides = [1, 1]} : vector<2x128xf32> to vector<2x32xf32>
    %325 = arith.negf %324 : vector<2x32xf32>
    %326 = math.exp %325 : vector<2x32xf32>
    %cst_83 = arith.constant 1.000000e+00 : f32
    %327 = vector.broadcast %cst_83 : f32 to vector<2x32xf32>
    %328 = arith.addf %327, %326 : vector<2x32xf32>
    %329 = arith.divf %327, %328 : vector<2x32xf32>
    %330 = arith.mulf %321, %265 : vector<2x32xf32>
    %331 = arith.mulf %315, %323 : vector<2x32xf32>
    %332 = arith.addf %330, %331 : vector<2x32xf32>
    %333 = math.tanh %332 : vector<2x32xf32>
    %334 = arith.mulf %329, %333 : vector<2x32xf32>
    %335 = vector.shape_cast %334 : vector<2x32xf32> to vector<1x2x32xf32>
    %336 = arith.index_cast %304 : i32 to index
    %c0_84 = arith.constant 0 : index
    %c32_85 = arith.constant 32 : index
    %337 = vector.load %arg4[%336, %c0_84, %c32_85] : memref<8x2x64xf32, #tpu.memory_space<vmem>>, vector<1x2x32xf32>
    tpu.vector_store %arg4[%336, %c0_84, %c32_85], %335 {strides = array<i32>} : memref<8x2x64xf32, #tpu.memory_space<vmem>>, vector<1x2x32xf32>,
    %c5_i32 = arith.constant 5 : i32
    %338 = arith.index_cast %c5_i32 : i32 to index
    %c0_86 = arith.constant 0 : index
    %c0_87 = arith.constant 0 : index
    %339 = vector.load %arg0[%338, %c0_86, %c0_87] : memref<8x2x128xf32, #tpu.memory_space<vmem>>, vector<1x2x128xf32>
    %340 = vector.shape_cast %339 : vector<1x2x128xf32> to vector<2x128xf32>
    %cst_88 = arith.constant dense<0.000000e+00> : vector<2x128xf32>
    %341 = tpu.matmul %300, %0, %cst_88 {dimension_numbers = #tpu.dot_dimension_numbers<[1], [0], [0], [1], [0, 0, 1, 1], [], []>} : vector<2x32xf32>, vector<32x128xf32>, vector<2x128xf32> -> vector<2x128xf32>
    %342 = arith.addf %340, %341 : vector<2x128xf32>
    %343 = vector.extract_strided_slice %342 {offsets = [0, 0], sizes = [2, 32], strides = [1, 1]} : vector<2x128xf32> to vector<2x32xf32>
    %344 = arith.negf %343 : vector<2x32xf32>
    %345 = math.exp %344 : vector<2x32xf32>
    %cst_89 = arith.constant 1.000000e+00 : f32
    %346 = vector.broadcast %cst_89 : f32 to vector<2x32xf32>
    %347 = arith.addf %346, %345 : vector<2x32xf32>
    %348 = arith.divf %346, %347 : vector<2x32xf32>
    %349 = vector.extract_strided_slice %342 {offsets = [0, 32], sizes = [2, 32], strides = [1, 1]} : vector<2x128xf32> to vector<2x32xf32>
    %350 = arith.negf %349 : vector<2x32xf32>
    %351 = math.exp %350 : vector<2x32xf32>
    %cst_90 = arith.constant 1.000000e+00 : f32
    %352 = vector.broadcast %cst_90 : f32 to vector<2x32xf32>
    %353 = arith.addf %352, %351 : vector<2x32xf32>
    %354 = arith.divf %352, %353 : vector<2x32xf32>
    %355 = vector.extract_strided_slice %342 {offsets = [0, 64], sizes = [2, 32], strides = [1, 1]} : vector<2x128xf32> to vector<2x32xf32>
    %356 = math.tanh %355 : vector<2x32xf32>
    %357 = vector.extract_strided_slice %342 {offsets = [0, 96], sizes = [2, 32], strides = [1, 1]} : vector<2x128xf32> to vector<2x32xf32>
    %358 = arith.negf %357 : vector<2x32xf32>
    %359 = math.exp %358 : vector<2x32xf32>
    %cst_91 = arith.constant 1.000000e+00 : f32
    %360 = vector.broadcast %cst_91 : f32 to vector<2x32xf32>
    %361 = arith.addf %360, %359 : vector<2x32xf32>
    %362 = arith.divf %360, %361 : vector<2x32xf32>
    %363 = arith.mulf %354, %298 : vector<2x32xf32>
    %364 = arith.mulf %348, %356 : vector<2x32xf32>
    %365 = arith.addf %363, %364 : vector<2x32xf32>
    %366 = math.tanh %365 : vector<2x32xf32>
    %367 = arith.mulf %362, %366 : vector<2x32xf32>
    %368 = vector.shape_cast %367 : vector<2x32xf32> to vector<1x2x32xf32>
    %369 = arith.index_cast %c5_i32 : i32 to index
    %c0_92 = arith.constant 0 : index
    %c0_93 = arith.constant 0 : index
    %370 = vector.load %arg4[%369, %c0_92, %c0_93] : memref<8x2x64xf32, #tpu.memory_space<vmem>>, vector<1x2x32xf32>
    tpu.vector_store %arg4[%369, %c0_92, %c0_93], %368 {strides = array<i32>} : memref<8x2x64xf32, #tpu.memory_space<vmem>>, vector<1x2x32xf32>,
    %c7_i32_94 = arith.constant 7 : i32
    %371 = arith.subi %c7_i32_94, %c5_i32 : i32
    %372 = arith.index_cast %371 : i32 to index
    %c0_95 = arith.constant 0 : index
    %c0_96 = arith.constant 0 : index
    %373 = vector.load %arg1[%372, %c0_95, %c0_96] : memref<8x2x128xf32, #tpu.memory_space<vmem>>, vector<1x2x128xf32>
    %374 = vector.shape_cast %373 : vector<1x2x128xf32> to vector<2x128xf32>
    %cst_97 = arith.constant dense<0.000000e+00> : vector<2x128xf32>
    %375 = tpu.matmul %334, %1, %cst_97 {dimension_numbers = #tpu.dot_dimension_numbers<[1], [0], [0], [1], [0, 0, 1, 1], [], []>} : vector<2x32xf32>, vector<32x128xf32>, vector<2x128xf32> -> vector<2x128xf32>
    %376 = arith.addf %374, %375 : vector<2x128xf32>
    %377 = vector.extract_strided_slice %376 {offsets = [0, 0], sizes = [2, 32], strides = [1, 1]} : vector<2x128xf32> to vector<2x32xf32>
    %378 = arith.negf %377 : vector<2x32xf32>
    %379 = math.exp %378 : vector<2x32xf32>
    %cst_98 = arith.constant 1.000000e+00 : f32
    %380 = vector.broadcast %cst_98 : f32 to vector<2x32xf32>
    %381 = arith.addf %380, %379 : vector<2x32xf32>
    %382 = arith.divf %380, %381 : vector<2x32xf32>
    %383 = vector.extract_strided_slice %376 {offsets = [0, 32], sizes = [2, 32], strides = [1, 1]} : vector<2x128xf32> to vector<2x32xf32>
    %384 = arith.negf %383 : vector<2x32xf32>
    %385 = math.exp %384 : vector<2x32xf32>
    %cst_99 = arith.constant 1.000000e+00 : f32
    %386 = vector.broadcast %cst_99 : f32 to vector<2x32xf32>
    %387 = arith.addf %386, %385 : vector<2x32xf32>
    %388 = arith.divf %386, %387 : vector<2x32xf32>
    %389 = vector.extract_strided_slice %376 {offsets = [0, 64], sizes = [2, 32], strides = [1, 1]} : vector<2x128xf32> to vector<2x32xf32>
    %390 = math.tanh %389 : vector<2x32xf32>
    %391 = vector.extract_strided_slice %376 {offsets = [0, 96], sizes = [2, 32], strides = [1, 1]} : vector<2x128xf32> to vector<2x32xf32>
    %392 = arith.negf %391 : vector<2x32xf32>
    %393 = math.exp %392 : vector<2x32xf32>
    %cst_100 = arith.constant 1.000000e+00 : f32
    %394 = vector.broadcast %cst_100 : f32 to vector<2x32xf32>
    %395 = arith.addf %394, %393 : vector<2x32xf32>
    %396 = arith.divf %394, %395 : vector<2x32xf32>
    %397 = arith.mulf %388, %332 : vector<2x32xf32>
    %398 = arith.mulf %382, %390 : vector<2x32xf32>
    %399 = arith.addf %397, %398 : vector<2x32xf32>
    %400 = math.tanh %399 : vector<2x32xf32>
    %401 = arith.mulf %396, %400 : vector<2x32xf32>
    %402 = vector.shape_cast %401 : vector<2x32xf32> to vector<1x2x32xf32>
    %403 = arith.index_cast %371 : i32 to index
    %c0_101 = arith.constant 0 : index
    %c32_102 = arith.constant 32 : index
    %404 = vector.load %arg4[%403, %c0_101, %c32_102] : memref<8x2x64xf32, #tpu.memory_space<vmem>>, vector<1x2x32xf32>
    tpu.vector_store %arg4[%403, %c0_101, %c32_102], %402 {strides = array<i32>} : memref<8x2x64xf32, #tpu.memory_space<vmem>>, vector<1x2x32xf32>,
    %c6_i32 = arith.constant 6 : i32
    %405 = arith.index_cast %c6_i32 : i32 to index
    %c0_103 = arith.constant 0 : index
    %c0_104 = arith.constant 0 : index
    %406 = vector.load %arg0[%405, %c0_103, %c0_104] : memref<8x2x128xf32, #tpu.memory_space<vmem>>, vector<1x2x128xf32>
    %407 = vector.shape_cast %406 : vector<1x2x128xf32> to vector<2x128xf32>
    %cst_105 = arith.constant dense<0.000000e+00> : vector<2x128xf32>
    %408 = tpu.matmul %367, %0, %cst_105 {dimension_numbers = #tpu.dot_dimension_numbers<[1], [0], [0], [1], [0, 0, 1, 1], [], []>} : vector<2x32xf32>, vector<32x128xf32>, vector<2x128xf32> -> vector<2x128xf32>
    %409 = arith.addf %407, %408 : vector<2x128xf32>
    %410 = vector.extract_strided_slice %409 {offsets = [0, 0], sizes = [2, 32], strides = [1, 1]} : vector<2x128xf32> to vector<2x32xf32>
    %411 = arith.negf %410 : vector<2x32xf32>
    %412 = math.exp %411 : vector<2x32xf32>
    %cst_106 = arith.constant 1.000000e+00 : f32
    %413 = vector.broadcast %cst_106 : f32 to vector<2x32xf32>
    %414 = arith.addf %413, %412 : vector<2x32xf32>
    %415 = arith.divf %413, %414 : vector<2x32xf32>
    %416 = vector.extract_strided_slice %409 {offsets = [0, 32], sizes = [2, 32], strides = [1, 1]} : vector<2x128xf32> to vector<2x32xf32>
    %417 = arith.negf %416 : vector<2x32xf32>
    %418 = math.exp %417 : vector<2x32xf32>
    %cst_107 = arith.constant 1.000000e+00 : f32
    %419 = vector.broadcast %cst_107 : f32 to vector<2x32xf32>
    %420 = arith.addf %419, %418 : vector<2x32xf32>
    %421 = arith.divf %419, %420 : vector<2x32xf32>
    %422 = vector.extract_strided_slice %409 {offsets = [0, 64], sizes = [2, 32], strides = [1, 1]} : vector<2x128xf32> to vector<2x32xf32>
    %423 = math.tanh %422 : vector<2x32xf32>
    %424 = vector.extract_strided_slice %409 {offsets = [0, 96], sizes = [2, 32], strides = [1, 1]} : vector<2x128xf32> to vector<2x32xf32>
    %425 = arith.negf %424 : vector<2x32xf32>
    %426 = math.exp %425 : vector<2x32xf32>
    %cst_108 = arith.constant 1.000000e+00 : f32
    %427 = vector.broadcast %cst_108 : f32 to vector<2x32xf32>
    %428 = arith.addf %427, %426 : vector<2x32xf32>
    %429 = arith.divf %427, %428 : vector<2x32xf32>
    %430 = arith.mulf %421, %365 : vector<2x32xf32>
    %431 = arith.mulf %415, %423 : vector<2x32xf32>
    %432 = arith.addf %430, %431 : vector<2x32xf32>
    %433 = math.tanh %432 : vector<2x32xf32>
    %434 = arith.mulf %429, %433 : vector<2x32xf32>
    %435 = vector.shape_cast %434 : vector<2x32xf32> to vector<1x2x32xf32>
    %436 = arith.index_cast %c6_i32 : i32 to index
    %c0_109 = arith.constant 0 : index
    %c0_110 = arith.constant 0 : index
    %437 = vector.load %arg4[%436, %c0_109, %c0_110] : memref<8x2x64xf32, #tpu.memory_space<vmem>>, vector<1x2x32xf32>
    tpu.vector_store %arg4[%436, %c0_109, %c0_110], %435 {strides = array<i32>} : memref<8x2x64xf32, #tpu.memory_space<vmem>>, vector<1x2x32xf32>,
    %c7_i32_111 = arith.constant 7 : i32
    %438 = arith.subi %c7_i32_111, %c6_i32 : i32
    %439 = arith.index_cast %438 : i32 to index
    %c0_112 = arith.constant 0 : index
    %c0_113 = arith.constant 0 : index
    %440 = vector.load %arg1[%439, %c0_112, %c0_113] : memref<8x2x128xf32, #tpu.memory_space<vmem>>, vector<1x2x128xf32>
    %441 = vector.shape_cast %440 : vector<1x2x128xf32> to vector<2x128xf32>
    %cst_114 = arith.constant dense<0.000000e+00> : vector<2x128xf32>
    %442 = tpu.matmul %401, %1, %cst_114 {dimension_numbers = #tpu.dot_dimension_numbers<[1], [0], [0], [1], [0, 0, 1, 1], [], []>} : vector<2x32xf32>, vector<32x128xf32>, vector<2x128xf32> -> vector<2x128xf32>
    %443 = arith.addf %441, %442 : vector<2x128xf32>
    %444 = vector.extract_strided_slice %443 {offsets = [0, 0], sizes = [2, 32], strides = [1, 1]} : vector<2x128xf32> to vector<2x32xf32>
    %445 = arith.negf %444 : vector<2x32xf32>
    %446 = math.exp %445 : vector<2x32xf32>
    %cst_115 = arith.constant 1.000000e+00 : f32
    %447 = vector.broadcast %cst_115 : f32 to vector<2x32xf32>
    %448 = arith.addf %447, %446 : vector<2x32xf32>
    %449 = arith.divf %447, %448 : vector<2x32xf32>
    %450 = vector.extract_strided_slice %443 {offsets = [0, 32], sizes = [2, 32], strides = [1, 1]} : vector<2x128xf32> to vector<2x32xf32>
    %451 = arith.negf %450 : vector<2x32xf32>
    %452 = math.exp %451 : vector<2x32xf32>
    %cst_116 = arith.constant 1.000000e+00 : f32
    %453 = vector.broadcast %cst_116 : f32 to vector<2x32xf32>
    %454 = arith.addf %453, %452 : vector<2x32xf32>
    %455 = arith.divf %453, %454 : vector<2x32xf32>
    %456 = vector.extract_strided_slice %443 {offsets = [0, 64], sizes = [2, 32], strides = [1, 1]} : vector<2x128xf32> to vector<2x32xf32>
    %457 = math.tanh %456 : vector<2x32xf32>
    %458 = vector.extract_strided_slice %443 {offsets = [0, 96], sizes = [2, 32], strides = [1, 1]} : vector<2x128xf32> to vector<2x32xf32>
    %459 = arith.negf %458 : vector<2x32xf32>
    %460 = math.exp %459 : vector<2x32xf32>
    %cst_117 = arith.constant 1.000000e+00 : f32
    %461 = vector.broadcast %cst_117 : f32 to vector<2x32xf32>
    %462 = arith.addf %461, %460 : vector<2x32xf32>
    %463 = arith.divf %461, %462 : vector<2x32xf32>
    %464 = arith.mulf %455, %399 : vector<2x32xf32>
    %465 = arith.mulf %449, %457 : vector<2x32xf32>
    %466 = arith.addf %464, %465 : vector<2x32xf32>
    %467 = math.tanh %466 : vector<2x32xf32>
    %468 = arith.mulf %463, %467 : vector<2x32xf32>
    %469 = vector.shape_cast %468 : vector<2x32xf32> to vector<1x2x32xf32>
    %470 = arith.index_cast %438 : i32 to index
    %c0_118 = arith.constant 0 : index
    %c32_119 = arith.constant 32 : index
    %471 = vector.load %arg4[%470, %c0_118, %c32_119] : memref<8x2x64xf32, #tpu.memory_space<vmem>>, vector<1x2x32xf32>
    tpu.vector_store %arg4[%470, %c0_118, %c32_119], %469 {strides = array<i32>} : memref<8x2x64xf32, #tpu.memory_space<vmem>>, vector<1x2x32xf32>,
    %c7_i32_120 = arith.constant 7 : i32
    %472 = arith.index_cast %c7_i32_120 : i32 to index
    %c0_121 = arith.constant 0 : index
    %c0_122 = arith.constant 0 : index
    %473 = vector.load %arg0[%472, %c0_121, %c0_122] : memref<8x2x128xf32, #tpu.memory_space<vmem>>, vector<1x2x128xf32>
    %474 = vector.shape_cast %473 : vector<1x2x128xf32> to vector<2x128xf32>
    %cst_123 = arith.constant dense<0.000000e+00> : vector<2x128xf32>
    %475 = tpu.matmul %434, %0, %cst_123 {dimension_numbers = #tpu.dot_dimension_numbers<[1], [0], [0], [1], [0, 0, 1, 1], [], []>} : vector<2x32xf32>, vector<32x128xf32>, vector<2x128xf32> -> vector<2x128xf32>
    %476 = arith.addf %474, %475 : vector<2x128xf32>
    %477 = vector.extract_strided_slice %476 {offsets = [0, 0], sizes = [2, 32], strides = [1, 1]} : vector<2x128xf32> to vector<2x32xf32>
    %478 = arith.negf %477 : vector<2x32xf32>
    %479 = math.exp %478 : vector<2x32xf32>
    %cst_124 = arith.constant 1.000000e+00 : f32
    %480 = vector.broadcast %cst_124 : f32 to vector<2x32xf32>
    %481 = arith.addf %480, %479 : vector<2x32xf32>
    %482 = arith.divf %480, %481 : vector<2x32xf32>
    %483 = vector.extract_strided_slice %476 {offsets = [0, 32], sizes = [2, 32], strides = [1, 1]} : vector<2x128xf32> to vector<2x32xf32>
    %484 = arith.negf %483 : vector<2x32xf32>
    %485 = math.exp %484 : vector<2x32xf32>
    %cst_125 = arith.constant 1.000000e+00 : f32
    %486 = vector.broadcast %cst_125 : f32 to vector<2x32xf32>
    %487 = arith.addf %486, %485 : vector<2x32xf32>
    %488 = arith.divf %486, %487 : vector<2x32xf32>
    %489 = vector.extract_strided_slice %476 {offsets = [0, 64], sizes = [2, 32], strides = [1, 1]} : vector<2x128xf32> to vector<2x32xf32>
    %490 = math.tanh %489 : vector<2x32xf32>
    %491 = vector.extract_strided_slice %476 {offsets = [0, 96], sizes = [2, 32], strides = [1, 1]} : vector<2x128xf32> to vector<2x32xf32>
    %492 = arith.negf %491 : vector<2x32xf32>
    %493 = math.exp %492 : vector<2x32xf32>
    %cst_126 = arith.constant 1.000000e+00 : f32
    %494 = vector.broadcast %cst_126 : f32 to vector<2x32xf32>
    %495 = arith.addf %494, %493 : vector<2x32xf32>
    %496 = arith.divf %494, %495 : vector<2x32xf32>
    %497 = arith.mulf %488, %432 : vector<2x32xf32>
    %498 = arith.mulf %482, %490 : vector<2x32xf32>
    %499 = arith.addf %497, %498 : vector<2x32xf32>
    %500 = math.tanh %499 : vector<2x32xf32>
    %501 = arith.mulf %496, %500 : vector<2x32xf32>
    %502 = vector.shape_cast %501 : vector<2x32xf32> to vector<1x2x32xf32>
    %503 = arith.index_cast %c7_i32_120 : i32 to index
    %c0_127 = arith.constant 0 : index
    %c0_128 = arith.constant 0 : index
    %504 = vector.load %arg4[%503, %c0_127, %c0_128] : memref<8x2x64xf32, #tpu.memory_space<vmem>>, vector<1x2x32xf32>
    tpu.vector_store %arg4[%503, %c0_127, %c0_128], %502 {strides = array<i32>} : memref<8x2x64xf32, #tpu.memory_space<vmem>>, vector<1x2x32xf32>,
    %c7_i32_129 = arith.constant 7 : i32
    %505 = arith.subi %c7_i32_129, %c7_i32_120 : i32
    %506 = arith.index_cast %505 : i32 to index
    %c0_130 = arith.constant 0 : index
    %c0_131 = arith.constant 0 : index
    %507 = vector.load %arg1[%506, %c0_130, %c0_131] : memref<8x2x128xf32, #tpu.memory_space<vmem>>, vector<1x2x128xf32>
    %508 = vector.shape_cast %507 : vector<1x2x128xf32> to vector<2x128xf32>
    %cst_132 = arith.constant dense<0.000000e+00> : vector<2x128xf32>
    %509 = tpu.matmul %468, %1, %cst_132 {dimension_numbers = #tpu.dot_dimension_numbers<[1], [0], [0], [1], [0, 0, 1, 1], [], []>} : vector<2x32xf32>, vector<32x128xf32>, vector<2x128xf32> -> vector<2x128xf32>
    %510 = arith.addf %508, %509 : vector<2x128xf32>
    %511 = vector.extract_strided_slice %510 {offsets = [0, 0], sizes = [2, 32], strides = [1, 1]} : vector<2x128xf32> to vector<2x32xf32>
    %512 = arith.negf %511 : vector<2x32xf32>
    %513 = math.exp %512 : vector<2x32xf32>
    %cst_133 = arith.constant 1.000000e+00 : f32
    %514 = vector.broadcast %cst_133 : f32 to vector<2x32xf32>
    %515 = arith.addf %514, %513 : vector<2x32xf32>
    %516 = arith.divf %514, %515 : vector<2x32xf32>
    %517 = vector.extract_strided_slice %510 {offsets = [0, 32], sizes = [2, 32], strides = [1, 1]} : vector<2x128xf32> to vector<2x32xf32>
    %518 = arith.negf %517 : vector<2x32xf32>
    %519 = math.exp %518 : vector<2x32xf32>
    %cst_134 = arith.constant 1.000000e+00 : f32
    %520 = vector.broadcast %cst_134 : f32 to vector<2x32xf32>
    %521 = arith.addf %520, %519 : vector<2x32xf32>
    %522 = arith.divf %520, %521 : vector<2x32xf32>
    %523 = vector.extract_strided_slice %510 {offsets = [0, 64], sizes = [2, 32], strides = [1, 1]} : vector<2x128xf32> to vector<2x32xf32>
    %524 = math.tanh %523 : vector<2x32xf32>
    %525 = vector.extract_strided_slice %510 {offsets = [0, 96], sizes = [2, 32], strides = [1, 1]} : vector<2x128xf32> to vector<2x32xf32>
    %526 = arith.negf %525 : vector<2x32xf32>
    %527 = math.exp %526 : vector<2x32xf32>
    %cst_135 = arith.constant 1.000000e+00 : f32
    %528 = vector.broadcast %cst_135 : f32 to vector<2x32xf32>
    %529 = arith.addf %528, %527 : vector<2x32xf32>
    %530 = arith.divf %528, %529 : vector<2x32xf32>
    %531 = arith.mulf %522, %466 : vector<2x32xf32>
    %532 = arith.mulf %516, %524 : vector<2x32xf32>
    %533 = arith.addf %531, %532 : vector<2x32xf32>
    %534 = math.tanh %533 : vector<2x32xf32>
    %535 = arith.mulf %530, %534 : vector<2x32xf32>
    %536 = vector.shape_cast %535 : vector<2x32xf32> to vector<1x2x32xf32>
    %537 = arith.index_cast %505 : i32 to index
    %c0_136 = arith.constant 0 : index
    %c32_137 = arith.constant 32 : index
    %538 = vector.load %arg4[%537, %c0_136, %c32_137] : memref<8x2x64xf32, #tpu.memory_space<vmem>>, vector<1x2x32xf32>
    tpu.vector_store %arg4[%537, %c0_136, %c32_137], %536 {strides = array<i32>} : memref<8x2x64xf32, #tpu.memory_space<vmem>>, vector<1x2x32xf32>,
    %c8_i32 = arith.constant 8 : i32
    return
  }
}

</mosaic_0001>

<llo_original>
// kernel: sentence_classifier_forward.2
$region0: #{sentence_classifier_forward.2}
  #allocation0 [shape = 'u32[]', space=smem, size = 0x4, offset = 0x4, fixed_abs, tag = 'smem constant byte address 0x4 - core index']
  #allocation1 [shape = 'u32[72,128]{1,0:T(1,128)}', space=vmem, size = 0x9000, scoped, tag = 'internal scratch']
  %s0 = inlined_call_operand.vmem [shape: f32[8,2,128], index: 0, kind: input, shape index: {}]
  %s1 = inlined_call_operand.vmem [shape: f32[8,2,128], index: 1, kind: input, shape index: {}]
  %s2 = inlined_call_operand.vmem [shape: f32[32,128], index: 2, kind: input, shape index: {}]
  %s3 = inlined_call_operand.vmem [shape: f32[32,128], index: 3, kind: input, shape index: {}]
  %s4 = inlined_call_operand.vmem [shape: f32[8,2,64], index: 4, kind: output, shape index: {}]
  %s5 = sld [smem:[#allocation0]]
  $region26: #{sentence_classifier_forward.2} parent=0
    _
  %s7 = ssub.s32 1, %s5
  %s8 = scalar_select 0, %s7, %s5
  // Predicated region
  $region2: #{sentence_classifier_forward.2} parent=0 // pred_check
    _
  $region3: #{sentence_classifier_forward.2} parent=0 // pred_check_branch
    %10 = sbr.rel (0) target = $region5
  $region4: #{sentence_classifier_forward.2} parent=0 // pred_region
    _
  $region5: #{sentence_classifier_forward.2} parent=0 // pred_fallthru
    _
  // Predicated region
  $region6: #{sentence_classifier_forward.2} parent=0 // pred_check
    _
  $region7: #{sentence_classifier_forward.2} parent=0 // pred_check_branch
    %12 = sbr.rel (0) target = $region9
  $region8: #{sentence_classifier_forward.2} parent=0 // pred_region
    _
  $region9: #{sentence_classifier_forward.2} parent=0 // pred_fallthru
    _
  // Predicated region
  $region10: #{sentence_classifier_forward.2} parent=0 // pred_check
    _
  $region11: #{sentence_classifier_forward.2} parent=0 // pred_check_branch
    %14 = sbr.rel (0) target = $region13
  $region12: #{sentence_classifier_forward.2} parent=0 // pred_region
    _
  $region13: #{sentence_classifier_forward.2} parent=0 // pred_fallthru
    _
  // Predicated region
  $region14: #{sentence_classifier_forward.2} parent=0 // pred_check
    _
  $region15: #{sentence_classifier_forward.2} parent=0 // pred_check_branch
    %16 = sbr.rel (0) target = $region17
  $region16: #{sentence_classifier_forward.2} parent=0 // pred_region
    _
  $region17: #{sentence_classifier_forward.2} parent=0 // pred_fallthru
    _
  %v17 = vld [vmem:[%s2] sm:$0xff]
  %v18 = vld [vmem:[%s2 + $0x8] sm:$0xff]
  %v19 = vld [vmem:[%s2 + $0x10] sm:$0xff]
  %v20 = vld [vmem:[%s2 + $0x18] sm:$0xff]
  %v21 = vld [vmem:[%s3] sm:$0xff]
  %v22 = vld [vmem:[%s3 + $0x8] sm:$0xff]
  %v23 = vld [vmem:[%s3 + $0x10] sm:$0xff]
  %v24 = vld [vmem:[%s3 + $0x18] sm:$0xff]
  %v25 = vld [vmem:[%s0] sm:$0x3]
  %vm26 = vcmask 261120
  %v28 = vsel %vm26, 0.0, 0
  %30 = vmatpush.msra.mxu0 0.0
  %31 = vmatpush.msra.mxu0 0.0
  %32 = vmatpush.msra.mxu0 0.0
  %33 = vmatpush.msra.mxu0 0.0
  %34 = vmatpush.msra.mxu0 0.0
  %35 = vmatpush.msra.mxu0 0.0
  %36 = vmatpush.msra.mxu0 0.0
  %37 = vmatpush.msra.mxu0 0.0
  %38 = vmatpush.msra.mxu0 0.0
  %39 = vmatpush.msra.mxu0 0.0
  %40 = vmatpush.msra.mxu0 0.0
  %41 = vmatpush.msra.mxu0 0.0
  %42 = vmatpush.msra.mxu0 %v20
  %43 = vmatpush.msra.mxu0 %v19
  %44 = vmatpush.msra.mxu0 %v18
  %45 = vmatpush.msra.mxu0 %v17
  %46 = vmatmul.f32.gmra.mxu0 %v28
  %v47 = vpop.f32.mrf.mxu0
  %v48 = vadd.f32 0.0, %v47
  %49 = vdwg.mxu0
  %v50 = vadd.f32 %v25, %v48
  %v51 = vxor.u32 %v50, 2147483648
  %v52 = vmul.f32 %v51, 1.442695
  %v53 = vpow.pop %v52
  %v54 = vadd.f32 %v53, 1.0
  %v55 = vrcp.pop %v54
  %v56 = vmul.f32 %v54, %v55
  %v57 = vsub.f32 1.0, %v56
  %v58 = vmul.f32 %v55, %v57
  %v59 = vadd.f32 %v55, %v58
  %vm60 = vweird.f32 %v54
  %vm61 = vweird.f32 %v55
  %vm62 = vmor %vm60, %vm61
  %v63 = vsel %vm62, %v55, %v59
  %v64 = vand.u32 2147483647, %v54
  %vm65 = vcmp.eq.f32.partialorder %v64, 8.507059e+37
  %v66 = vand.u32 %v54, 2147483648
  %v67 = vor.u32 1.1754944e-38, %v66
  %v68 = vsel %vm65, %v67, %v63
  %v69 = vmul.f32 1.0, %v68
  %v70 = vtanh.pop %v50
  %v71 = vmul.f32 %v69, 0.0
  %73 = vrot.lane.b32.xlu0 %v70, 64
  %v74 = vpop.permute.xlu0 %73
  %v76 = vmul.f32 %v69, %v74
  %78 = vrot.lane.b32.xlu0 %v76, 32
  %v79 = vpop.permute.xlu0 %78
  %v81 = vadd.f32 %v71, %v79
  %v82 = vtanh.pop %v81
  %84 = vrot.lane.b32.xlu0 %v82, 64
  %v85 = vpop.permute.xlu0 %84
  %v87 = vmul.f32 %v69, %v85
  %89 = vrot.lane.b32.xlu0 %v87, 32
  %v90 = vpop.permute.xlu0 %89
  %vm92 = vcmask 254976
  %93 = vst.msk [vmem:[%s4] sm:$0x3] %vm92, %v90
  %s94 = scalar_lea.vmem %s1, 14
  %v95 = vld [vmem:[%s94] sm:$0x3]
  %96 = vmatpush.msra.mxu0 0.0
  %97 = vmatpush.msra.mxu0 0.0
  %98 = vmatpush.msra.mxu0 0.0
  %99 = vmatpush.msra.mxu0 0.0
  %100 = vmatpush.msra.mxu0 0.0
  %101 = vmatpush.msra.mxu0 0.0
  %102 = vmatpush.msra.mxu0 0.0
  %103 = vmatpush.msra.mxu0 0.0
  %104 = vmatpush.msra.mxu0 0.0
  %105 = vmatpush.msra.mxu0 0.0
  %106 = vmatpush.msra.mxu0 0.0
  %107 = vmatpush.msra.mxu0 0.0
  %108 = vmatpush.msra.mxu0 %v24
  %109 = vmatpush.msra.mxu0 %v23
  %110 = vmatpush.msra.mxu0 %v22
  %111 = vmatpush.msra.mxu0 %v21
  %112 = vmatmul.f32.gmra.mxu0 %v28
  %v113 = vpop.f32.mrf.mxu0
  %v114 = vadd.f32 0.0, %v113
  %115 = vdwg.mxu0
  %v116 = vadd.f32 %v95, %v114
  %v117 = vxor.u32 %v116, 2147483648
  %v118 = vmul.f32 %v117, 1.442695
  %v119 = vpow.pop %v118
  %v120 = vadd.f32 %v119, 1.0
  %v121 = vrcp.pop %v120
  %v122 = vmul.f32 %v120, %v121
  %v123 = vsub.f32 1.0, %v122
  %v124 = vmul.f32 %v121, %v123
  %v125 = vadd.f32 %v121, %v124
  %vm126 = vweird.f32 %v120
  %vm127 = vweird.f32 %v121
  %vm128 = vmor %vm126, %vm127
  %v129 = vsel %vm128, %v121, %v125
  %v130 = vand.u32 2147483647, %v120
  %vm131 = vcmp.eq.f32.partialorder %v130, 8.507059e+37
  %v132 = vand.u32 %v120, 2147483648
  %v133 = vor.u32 1.1754944e-38, %v132
  %v134 = vsel %vm131, %v133, %v129
  %v135 = vmul.f32 1.0, %v134
  %v136 = vtanh.pop %v116
  %v137 = vmul.f32 %v135, 0.0
  %139 = vrot.lane.b32.xlu0 %v136, 64
  %v140 = vpop.permute.xlu0 %139
  %v142 = vmul.f32 %v135, %v140
  %144 = vrot.lane.b32.xlu0 %v142, 32
  %v145 = vpop.permute.xlu0 %144
  %v147 = vadd.f32 %v137, %v145
  %v148 = vtanh.pop %v147
  %150 = vrot.lane.b32.xlu0 %v148, 64
  %v151 = vpop.permute.xlu0 %150
  %v153 = vmul.f32 %v135, %v151
  %155 = vrot.lane.b32.xlu0 %v153, 64
  %v156 = vpop.permute.xlu0 %155
  %s158 = scalar_lea.vmem %s4, 14
  %vm159 = vcmask 517376
  %160 = vst.msk [vmem:[%s158] sm:$0x3] %vm159, %v156
  %s161 = scalar_lea.vmem %s0, 2
  %v162 = vld [vmem:[%s161] sm:$0x3]
  %v163 = vsel %vm26, %v90, 0
  %165 = vmatpush.msra.mxu0 0.0
  %166 = vmatpush.msra.mxu0 0.0
  %167 = vmatpush.msra.mxu0 0.0
  %168 = vmatpush.msra.mxu0 0.0
  %169 = vmatpush.msra.mxu0 0.0
  %170 = vmatpush.msra.mxu0 0.0
  %171 = vmatpush.msra.mxu0 0.0
  %172 = vmatpush.msra.mxu0 0.0
  %173 = vmatpush.msra.mxu0 0.0
  %174 = vmatpush.msra.mxu0 0.0
  %175 = vmatpush.msra.mxu0 0.0
  %176 = vmatpush.msra.mxu0 0.0
  %177 = vmatpush.msra.mxu0 %v20
  %178 = vmatpush.msra.mxu0 %v19
  %179 = vmatpush.msra.mxu0 %v18
  %180 = vmatpush.msra.mxu0 %v17
  %181 = vmatmul.f32.gmra.mxu0 %v163
  %v182 = vpop.f32.mrf.mxu0
  %v183 = vadd.f32 0.0, %v182
  %184 = vdwg.mxu0
  %v185 = vadd.f32 %v162, %v183
  %v186 = vxor.u32 %v185, 2147483648
  %v187 = vmul.f32 %v186, 1.442695
  %v188 = vpow.pop %v187
  %v189 = vadd.f32 %v188, 1.0
  %v190 = vrcp.pop %v189
  %v191 = vmul.f32 %v189, %v190
  %v192 = vsub.f32 1.0, %v191
  %v193 = vmul.f32 %v190, %v192
  %v194 = vadd.f32 %v190, %v193
  %vm195 = vweird.f32 %v189
  %vm196 = vweird.f32 %v190
  %vm197 = vmor %vm195, %vm196
  %v198 = vsel %vm197, %v190, %v194
  %v199 = vand.u32 2147483647, %v189
  %vm200 = vcmp.eq.f32.partialorder %v199, 8.507059e+37
  %v201 = vand.u32 %v189, 2147483648
  %v202 = vor.u32 1.1754944e-38, %v201
  %v203 = vsel %vm200, %v202, %v198
  %v204 = vmul.f32 1.0, %v203
  %v205 = vtanh.pop %v185
  %v206 = vmul.f32 %v204, %v81
  %208 = vrot.lane.b32.xlu0 %v205, 64
  %v209 = vpop.permute.xlu0 %208
  %v211 = vmul.f32 %v204, %v209
  %213 = vrot.lane.b32.xlu0 %v211, 32
  %v214 = vpop.permute.xlu0 %213
  %v216 = vadd.f32 %v206, %v214
  %v217 = vtanh.pop %v216
  %219 = vrot.lane.b32.xlu0 %v217, 64
  %v220 = vpop.permute.xlu0 %219
  %v222 = vmul.f32 %v204, %v220
  %224 = vrot.lane.b32.xlu0 %v222, 32
  %v225 = vpop.permute.xlu0 %224
  %s227 = scalar_lea.vmem %s4, 2
  %228 = vst.msk [vmem:[%s227] sm:$0x3] %vm92, %v225
  %s229 = scalar_lea.vmem %s1, 12
  %v230 = vld [vmem:[%s229] sm:$0x3]
  %231 = vrot.lane.b32.xlu0 %v153, 32
  %v232 = vpop.permute.xlu0 %231
  %v233 = vsel %vm26, %v232, 0
  %235 = vmatpush.msra.mxu0 0.0
  %236 = vmatpush.msra.mxu0 0.0
  %237 = vmatpush.msra.mxu0 0.0
  %238 = vmatpush.msra.mxu0 0.0
  %239 = vmatpush.msra.mxu0 0.0
  %240 = vmatpush.msra.mxu0 0.0
  %241 = vmatpush.msra.mxu0 0.0
  %242 = vmatpush.msra.mxu0 0.0
  %243 = vmatpush.msra.mxu0 0.0
  %244 = vmatpush.msra.mxu0 0.0
  %245 = vmatpush.msra.mxu0 0.0
  %246 = vmatpush.msra.mxu0 0.0
  %247 = vmatpush.msra.mxu0 %v24
  %248 = vmatpush.msra.mxu0 %v23
  %249 = vmatpush.msra.mxu0 %v22
  %250 = vmatpush.msra.mxu0 %v21
  %251 = vmatmul.f32.gmra.mxu0 %v233
  %v252 = vpop.f32.mrf.mxu0
  %v253 = vadd.f32 0.0, %v252
  %254 = vdwg.mxu0
  %v255 = vadd.f32 %v230, %v253
  %v256 = vxor.u32 %v255, 2147483648
  %v257 = vmul.f32 %v256, 1.442695
  %v258 = vpow.pop %v257
  %v259 = vadd.f32 %v258, 1.0
  %v260 = vrcp.pop %v259
  %v261 = vmul.f32 %v259, %v260
  %v262 = vsub.f32 1.0, %v261
  %v263 = vmul.f32 %v260, %v262
  %v264 = vadd.f32 %v260, %v263
  %vm265 = vweird.f32 %v259
  %vm266 = vweird.f32 %v260
  %vm267 = vmor %vm265, %vm266
  %v268 = vsel %vm267, %v260, %v264
  %v269 = vand.u32 2147483647, %v259
  %vm270 = vcmp.eq.f32.partialorder %v269, 8.507059e+37
  %v271 = vand.u32 %v259, 2147483648
  %v272 = vor.u32 1.1754944e-38, %v271
  %v273 = vsel %vm270, %v272, %v268
  %v274 = vmul.f32 1.0, %v273
  %v275 = vtanh.pop %v255
  %v276 = vmul.f32 %v274, %v147
  %278 = vrot.lane.b32.xlu0 %v275, 64
  %v279 = vpop.permute.xlu0 %278
  %v281 = vmul.f32 %v274, %v279
  %283 = vrot.lane.b32.xlu0 %v281, 32
  %v284 = vpop.permute.xlu0 %283
  %v286 = vadd.f32 %v276, %v284
  %v287 = vtanh.pop %v286
  %289 = vrot.lane.b32.xlu0 %v287, 64
  %v290 = vpop.permute.xlu0 %289
  %v292 = vmul.f32 %v274, %v290
  %294 = vrot.lane.b32.xlu0 %v292, 64
  %v295 = vpop.permute.xlu0 %294
  %s297 = scalar_lea.vmem %s4, 12
  %298 = vst.msk [vmem:[%s297] sm:$0x3] %vm159, %v295
  %s299 = scalar_lea.vmem %s0, 4
  %v300 = vld [vmem:[%s299] sm:$0x3]
  %v301 = vsel %vm26, %v225, 0
  %303 = vmatpush.msra.mxu0 0.0
  %304 = vmatpush.msra.mxu0 0.0
  %305 = vmatpush.msra.mxu0 0.0
  %306 = vmatpush.msra.mxu0 0.0
  %307 = vmatpush.msra.mxu0 0.0
  %308 = vmatpush.msra.mxu0 0.0
  %309 = vmatpush.msra.mxu0 0.0
  %310 = vmatpush.msra.mxu0 0.0
  %311 = vmatpush.msra.mxu0 0.0
  %312 = vmatpush.msra.mxu0 0.0
  %313 = vmatpush.msra.mxu0 0.0
  %314 = vmatpush.msra.mxu0 0.0
  %315 = vmatpush.msra.mxu0 %v20
  %316 = vmatpush.msra.mxu0 %v19
  %317 = vmatpush.msra.mxu0 %v18
  %318 = vmatpush.msra.mxu0 %v17
  %319 = vmatmul.f32.gmra.mxu0 %v301
  %v320 = vpop.f32.mrf.mxu0
  %v321 = vadd.f32 0.0, %v320
  %322 = vdwg.mxu0
  %v323 = vadd.f32 %v300, %v321
  %v324 = vxor.u32 %v323, 2147483648
  %v325 = vmul.f32 %v324, 1.442695
  %v326 = vpow.pop %v325
  %v327 = vadd.f32 %v326, 1.0
  %v328 = vrcp.pop %v327
  %v329 = vmul.f32 %v327, %v328
  %v330 = vsub.f32 1.0, %v329
  %v331 = vmul.f32 %v328, %v330
  %v332 = vadd.f32 %v328, %v331
  %vm333 = vweird.f32 %v327
  %vm334 = vweird.f32 %v328
  %vm335 = vmor %vm333, %vm334
  %v336 = vsel %vm335, %v328, %v332
  %v337 = vand.u32 2147483647, %v327
  %vm338 = vcmp.eq.f32.partialorder %v337, 8.507059e+37
  %v339 = vand.u32 %v327, 2147483648
  %v340 = vor.u32 1.1754944e-38, %v339
  %v341 = vsel %vm338, %v340, %v336
  %v342 = vmul.f32 1.0, %v341
  %v343 = vtanh.pop %v323
  %v344 = vmul.f32 %v342, %v216
  %346 = vrot.lane.b32.xlu0 %v343, 64
  %v347 = vpop.permute.xlu0 %346
  %v349 = vmul.f32 %v342, %v347
  %351 = vrot.lane.b32.xlu0 %v349, 32
  %v352 = vpop.permute.xlu0 %351
  %v354 = vadd.f32 %v344, %v352
  %v355 = vtanh.pop %v354
  %357 = vrot.lane.b32.xlu0 %v355, 64
  %v358 = vpop.permute.xlu0 %357
  %v360 = vmul.f32 %v342, %v358
  %362 = vrot.lane.b32.xlu0 %v360, 32
  %v363 = vpop.permute.xlu0 %362
  %s365 = scalar_lea.vmem %s4, 4
  %366 = vst.msk [vmem:[%s365] sm:$0x3] %vm92, %v363
  %s367 = scalar_lea.vmem %s1, 10
  %v368 = vld [vmem:[%s367] sm:$0x3]
  %369 = vrot.lane.b32.xlu0 %v292, 32
  %v370 = vpop.permute.xlu0 %369
  %v371 = vsel %vm26, %v370, 0
  %373 = vmatpush.msra.mxu0 0.0
  %374 = vmatpush.msra.mxu0 0.0
  %375 = vmatpush.msra.mxu0 0.0
  %376 = vmatpush.msra.mxu0 0.0
  %377 = vmatpush.msra.mxu0 0.0
  %378 = vmatpush.msra.mxu0 0.0
  %379 = vmatpush.msra.mxu0 0.0
  %380 = vmatpush.msra.mxu0 0.0
  %381 = vmatpush.msra.mxu0 0.0
  %382 = vmatpush.msra.mxu0 0.0
  %383 = vmatpush.msra.mxu0 0.0
  %384 = vmatpush.msra.mxu0 0.0
  %385 = vmatpush.msra.mxu0 %v24
  %386 = vmatpush.msra.mxu0 %v23
  %387 = vmatpush.msra.mxu0 %v22
  %388 = vmatpush.msra.mxu0 %v21
  %389 = vmatmul.f32.gmra.mxu0 %v371
  %v390 = vpop.f32.mrf.mxu0
  %v391 = vadd.f32 0.0, %v390
  %392 = vdwg.mxu0
  %v393 = vadd.f32 %v368, %v391
  %v394 = vxor.u32 %v393, 2147483648
  %v395 = vmul.f32 %v394, 1.442695
  %v396 = vpow.pop %v395
  %v397 = vadd.f32 %v396, 1.0
  %v398 = vrcp.pop %v397
  %v399 = vmul.f32 %v397, %v398
  %v400 = vsub.f32 1.0, %v399
  %v401 = vmul.f32 %v398, %v400
  %v402 = vadd.f32 %v398, %v401
  %vm403 = vweird.f32 %v397
  %vm404 = vweird.f32 %v398
  %vm405 = vmor %vm403, %vm404
  %v406 = vsel %vm405, %v398, %v402
  %v407 = vand.u32 2147483647, %v397
  %vm408 = vcmp.eq.f32.partialorder %v407, 8.507059e+37
  %v409 = vand.u32 %v397, 2147483648
  %v410 = vor.u32 1.1754944e-38, %v409
  %v411 = vsel %vm408, %v410, %v406
  %v412 = vmul.f32 1.0, %v411
  %v413 = vtanh.pop %v393
  %v414 = vmul.f32 %v412, %v286
  %416 = vrot.lane.b32.xlu0 %v413, 64
  %v417 = vpop.permute.xlu0 %416
  %v419 = vmul.f32 %v412, %v417
  %421 = vrot.lane.b32.xlu0 %v419, 32
  %v422 = vpop.permute.xlu0 %421
  %v424 = vadd.f32 %v414, %v422
  %v425 = vtanh.pop %v424
  %427 = vrot.lane.b32.xlu0 %v425, 64
  %v428 = vpop.permute.xlu0 %427
  %v430 = vmul.f32 %v412, %v428
  %432 = vrot.lane.b32.xlu0 %v430, 64
  %v433 = vpop.permute.xlu0 %432
  %s435 = scalar_lea.vmem %s4, 10
  %436 = vst.msk [vmem:[%s435] sm:$0x3] %vm159, %v433
  %s437 = scalar_lea.vmem %s0, 6
  %v438 = vld [vmem:[%s437] sm:$0x3]
  %v439 = vsel %vm26, %v363, 0
  %441 = vmatpush.msra.mxu0 0.0
  %442 = vmatpush.msra.mxu0 0.0
  %443 = vmatpush.msra.mxu0 0.0
  %444 = vmatpush.msra.mxu0 0.0
  %445 = vmatpush.msra.mxu0 0.0
  %446 = vmatpush.msra.mxu0 0.0
  %447 = vmatpush.msra.mxu0 0.0
  %448 = vmatpush.msra.mxu0 0.0
  %449 = vmatpush.msra.mxu0 0.0
  %450 = vmatpush.msra.mxu0 0.0
  %451 = vmatpush.msra.mxu0 0.0
  %452 = vmatpush.msra.mxu0 0.0
  %453 = vmatpush.msra.mxu0 %v20
  %454 = vmatpush.msra.mxu0 %v19
  %455 = vmatpush.msra.mxu0 %v18
  %456 = vmatpush.msra.mxu0 %v17
  %457 = vmatmul.f32.gmra.mxu0 %v439
  %v458 = vpop.f32.mrf.mxu0
  %v459 = vadd.f32 0.0, %v458
  %460 = vdwg.mxu0
  %v461 = vadd.f32 %v438, %v459
  %v462 = vxor.u32 %v461, 2147483648
  %v463 = vmul.f32 %v462, 1.442695
  %v464 = vpow.pop %v463
  %v465 = vadd.f32 %v464, 1.0
  %v466 = vrcp.pop %v465
  %v467 = vmul.f32 %v465, %v466
  %v468 = vsub.f32 1.0, %v467
  %v469 = vmul.f32 %v466, %v468
  %v470 = vadd.f32 %v466, %v469
  %vm471 = vweird.f32 %v465
  %vm472 = vweird.f32 %v466
  %vm473 = vmor %vm471, %vm472
  %v474 = vsel %vm473, %v466, %v470
  %v475 = vand.u32 2147483647, %v465
  %vm476 = vcmp.eq.f32.partialorder %v475, 8.507059e+37
  %v477 = vand.u32 %v465, 2147483648
  %v478 = vor.u32 1.1754944e-38, %v477
  %v479 = vsel %vm476, %v478, %v474
  %v480 = vmul.f32 1.0, %v479
  %v481 = vtanh.pop %v461
  %v482 = vmul.f32 %v480, %v354
  %484 = vrot.lane.b32.xlu0 %v481, 64
  %v485 = vpop.permute.xlu0 %484
  %v487 = vmul.f32 %v480, %v485
  %489 = vrot.lane.b32.xlu0 %v487, 32
  %v490 = vpop.permute.xlu0 %489
  %v492 = vadd.f32 %v482, %v490
  %v493 = vtanh.pop %v492
  %495 = vrot.lane.b32.xlu0 %v493, 64
  %v496 = vpop.permute.xlu0 %495
  %v498 = vmul.f32 %v480, %v496
  %500 = vrot.lane.b32.xlu0 %v498, 32
  %v501 = vpop.permute.xlu0 %500
  %s503 = scalar_lea.vmem %s4, 6
  %504 = vst.msk [vmem:[%s503] sm:$0x3] %vm92, %v501
  %s505 = scalar_lea.vmem %s1, 8
  %v506 = vld [vmem:[%s505] sm:$0x3]
  %507 = vrot.lane.b32.xlu0 %v430, 32
  %v508 = vpop.permute.xlu0 %507
  %v509 = vsel %vm26, %v508, 0
  %511 = vmatpush.msra.mxu0 0.0
  %512 = vmatpush.msra.mxu0 0.0
  %513 = vmatpush.msra.mxu0 0.0
  %514 = vmatpush.msra.mxu0 0.0
  %515 = vmatpush.msra.mxu0 0.0
  %516 = vmatpush.msra.mxu0 0.0
  %517 = vmatpush.msra.mxu0 0.0
  %518 = vmatpush.msra.mxu0 0.0
  %519 = vmatpush.msra.mxu0 0.0
  %520 = vmatpush.msra.mxu0 0.0
  %521 = vmatpush.msra.mxu0 0.0
  %522 = vmatpush.msra.mxu0 0.0
  %523 = vmatpush.msra.mxu0 %v24
  %524 = vmatpush.msra.mxu0 %v23
  %525 = vmatpush.msra.mxu0 %v22
  %526 = vmatpush.msra.mxu0 %v21
  %527 = vmatmul.f32.gmra.mxu0 %v509
  %v528 = vpop.f32.mrf.mxu0
  %v529 = vadd.f32 0.0, %v528
  %530 = vdwg.mxu0
  %v531 = vadd.f32 %v506, %v529
  %v532 = vxor.u32 %v531, 2147483648
  %v533 = vmul.f32 %v532, 1.442695
  %v534 = vpow.pop %v533
  %v535 = vadd.f32 %v534, 1.0
  %v536 = vrcp.pop %v535
  %v537 = vmul.f32 %v535, %v536
  %v538 = vsub.f32 1.0, %v537
  %v539 = vmul.f32 %v536, %v538
  %v540 = vadd.f32 %v536, %v539
  %vm541 = vweird.f32 %v535
  %vm542 = vweird.f32 %v536
  %vm543 = vmor %vm541, %vm542
  %v544 = vsel %vm543, %v536, %v540
  %v545 = vand.u32 2147483647, %v535
  %vm546 = vcmp.eq.f32.partialorder %v545, 8.507059e+37
  %v547 = vand.u32 %v535, 2147483648
  %v548 = vor.u32 1.1754944e-38, %v547
  %v549 = vsel %vm546, %v548, %v544
  %v550 = vmul.f32 1.0, %v549
  %v551 = vtanh.pop %v531
  %v552 = vmul.f32 %v550, %v424
  %554 = vrot.lane.b32.xlu0 %v551, 64
  %v555 = vpop.permute.xlu0 %554
  %v557 = vmul.f32 %v550, %v555
  %559 = vrot.lane.b32.xlu0 %v557, 32
  %v560 = vpop.permute.xlu0 %559
  %v562 = vadd.f32 %v552, %v560
  %v563 = vtanh.pop %v562
  %565 = vrot.lane.b32.xlu0 %v563, 64
  %v566 = vpop.permute.xlu0 %565
  %v568 = vmul.f32 %v550, %v566
  %570 = vrot.lane.b32.xlu0 %v568, 64
  %v571 = vpop.permute.xlu0 %570
  %s573 = scalar_lea.vmem %s4, 8
  %574 = vst.msk [vmem:[%s573] sm:$0x3] %vm159, %v571
  %s575 = scalar_lea.vmem %s0, 8
  %v576 = vld [vmem:[%s575] sm:$0x3]
  %v577 = vsel %vm26, %v501, 0
  %579 = vmatpush.msra.mxu0 0.0
  %580 = vmatpush.msra.mxu0 0.0
  %581 = vmatpush.msra.mxu0 0.0
  %582 = vmatpush.msra.mxu0 0.0
  %583 = vmatpush.msra.mxu0 0.0
  %584 = vmatpush.msra.mxu0 0.0
  %585 = vmatpush.msra.mxu0 0.0
  %586 = vmatpush.msra.mxu0 0.0
  %587 = vmatpush.msra.mxu0 0.0
  %588 = vmatpush.msra.mxu0 0.0
  %589 = vmatpush.msra.mxu0 0.0
  %590 = vmatpush.msra.mxu0 0.0
  %591 = vmatpush.msra.mxu0 %v20
  %592 = vmatpush.msra.mxu0 %v19
  %593 = vmatpush.msra.mxu0 %v18
  %594 = vmatpush.msra.mxu0 %v17
  %595 = vmatmul.f32.gmra.mxu0 %v577
  %v596 = vpop.f32.mrf.mxu0
  %v597 = vadd.f32 0.0, %v596
  %598 = vdwg.mxu0
  %v599 = vadd.f32 %v576, %v597
  %v600 = vxor.u32 %v599, 2147483648
  %v601 = vmul.f32 %v600, 1.442695
  %v602 = vpow.pop %v601
  %v603 = vadd.f32 %v602, 1.0
  %v604 = vrcp.pop %v603
  %v605 = vmul.f32 %v603, %v604
  %v606 = vsub.f32 1.0, %v605
  %v607 = vmul.f32 %v604, %v606
  %v608 = vadd.f32 %v604, %v607
  %vm609 = vweird.f32 %v603
  %vm610 = vweird.f32 %v604
  %vm611 = vmor %vm609, %vm610
  %v612 = vsel %vm611, %v604, %v608
  %v613 = vand.u32 2147483647, %v603
  %vm614 = vcmp.eq.f32.partialorder %v613, 8.507059e+37
  %v615 = vand.u32 %v603, 2147483648
  %v616 = vor.u32 1.1754944e-38, %v615
  %v617 = vsel %vm614, %v616, %v612
  %v618 = vmul.f32 1.0, %v617
  %v619 = vtanh.pop %v599
  %v620 = vmul.f32 %v618, %v492
  %622 = vrot.lane.b32.xlu0 %v619, 64
  %v623 = vpop.permute.xlu0 %622
  %v625 = vmul.f32 %v618, %v623
  %627 = vrot.lane.b32.xlu0 %v625, 32
  %v628 = vpop.permute.xlu0 %627
  %v630 = vadd.f32 %v620, %v628
  %v631 = vtanh.pop %v630
  %633 = vrot.lane.b32.xlu0 %v631, 64
  %v634 = vpop.permute.xlu0 %633
  %v636 = vmul.f32 %v618, %v634
  %638 = vrot.lane.b32.xlu0 %v636, 32
  %v639 = vpop.permute.xlu0 %638
  %641 = vst.msk [vmem:[%s573] sm:$0x3] %vm92, %v639
  %s642 = scalar_lea.vmem %s1, 6
  %v643 = vld [vmem:[%s642] sm:$0x3]
  %644 = vrot.lane.b32.xlu0 %v568, 32
  %v645 = vpop.permute.xlu0 %644
  %v646 = vsel %vm26, %v645, 0
  %648 = vmatpush.msra.mxu0 0.0
  %649 = vmatpush.msra.mxu0 0.0
  %650 = vmatpush.msra.mxu0 0.0
  %651 = vmatpush.msra.mxu0 0.0
  %652 = vmatpush.msra.mxu0 0.0
  %653 = vmatpush.msra.mxu0 0.0
  %654 = vmatpush.msra.mxu0 0.0
  %655 = vmatpush.msra.mxu0 0.0
  %656 = vmatpush.msra.mxu0 0.0
  %657 = vmatpush.msra.mxu0 0.0
  %658 = vmatpush.msra.mxu0 0.0
  %659 = vmatpush.msra.mxu0 0.0
  %660 = vmatpush.msra.mxu0 %v24
  %661 = vmatpush.msra.mxu0 %v23
  %662 = vmatpush.msra.mxu0 %v22
  %663 = vmatpush.msra.mxu0 %v21
  %664 = vmatmul.f32.gmra.mxu0 %v646
  %v665 = vpop.f32.mrf.mxu0
  %v666 = vadd.f32 0.0, %v665
  %667 = vdwg.mxu0
  %v668 = vadd.f32 %v643, %v666
  %v669 = vxor.u32 %v668, 2147483648
  %v670 = vmul.f32 %v669, 1.442695
  %v671 = vpow.pop %v670
  %v672 = vadd.f32 %v671, 1.0
  %v673 = vrcp.pop %v672
  %v674 = vmul.f32 %v672, %v673
  %v675 = vsub.f32 1.0, %v674
  %v676 = vmul.f32 %v673, %v675
  %v677 = vadd.f32 %v673, %v676
  %vm678 = vweird.f32 %v672
  %vm679 = vweird.f32 %v673
  %vm680 = vmor %vm678, %vm679
  %v681 = vsel %vm680, %v673, %v677
  %v682 = vand.u32 2147483647, %v672
  %vm683 = vcmp.eq.f32.partialorder %v682, 8.507059e+37
  %v684 = vand.u32 %v672, 2147483648
  %v685 = vor.u32 1.1754944e-38, %v684
  %v686 = vsel %vm683, %v685, %v681
  %v687 = vmul.f32 1.0, %v686
  %v688 = vtanh.pop %v668
  %v689 = vmul.f32 %v687, %v562
  %691 = vrot.lane.b32.xlu0 %v688, 64
  %v692 = vpop.permute.xlu0 %691
  %v694 = vmul.f32 %v687, %v692
  %696 = vrot.lane.b32.xlu0 %v694, 32
  %v697 = vpop.permute.xlu0 %696
  %v699 = vadd.f32 %v689, %v697
  %v700 = vtanh.pop %v699
  %702 = vrot.lane.b32.xlu0 %v700, 64
  %v703 = vpop.permute.xlu0 %702
  %v705 = vmul.f32 %v687, %v703
  %707 = vrot.lane.b32.xlu0 %v705, 64
  %v708 = vpop.permute.xlu0 %707
  %710 = vst.msk [vmem:[%s503] sm:$0x3] %vm159, %v708
  %s711 = scalar_lea.vmem %s0, 10
  %v712 = vld [vmem:[%s711] sm:$0x3]
  %v713 = vsel %vm26, %v639, 0
  %715 = vmatpush.msra.mxu0 0.0
  %716 = vmatpush.msra.mxu0 0.0
  %717 = vmatpush.msra.mxu0 0.0
  %718 = vmatpush.msra.mxu0 0.0
  %719 = vmatpush.msra.mxu0 0.0
  %720 = vmatpush.msra.mxu0 0.0
  %721 = vmatpush.msra.mxu0 0.0
  %722 = vmatpush.msra.mxu0 0.0
  %723 = vmatpush.msra.mxu0 0.0
  %724 = vmatpush.msra.mxu0 0.0
  %725 = vmatpush.msra.mxu0 0.0
  %726 = vmatpush.msra.mxu0 0.0
  %727 = vmatpush.msra.mxu0 %v20
  %728 = vmatpush.msra.mxu0 %v19
  %729 = vmatpush.msra.mxu0 %v18
  %730 = vmatpush.msra.mxu0 %v17
  %731 = vmatmul.f32.gmra.mxu0 %v713
  %v732 = vpop.f32.mrf.mxu0
  %v733 = vadd.f32 0.0, %v732
  %734 = vdwg.mxu0
  %v735 = vadd.f32 %v712, %v733
  %v736 = vxor.u32 %v735, 2147483648
  %v737 = vmul.f32 %v736, 1.442695
  %v738 = vpow.pop %v737
  %v739 = vadd.f32 %v738, 1.0
  %v740 = vrcp.pop %v739
  %v741 = vmul.f32 %v739, %v740
  %v742 = vsub.f32 1.0, %v741
  %v743 = vmul.f32 %v740, %v742
  %v744 = vadd.f32 %v740, %v743
  %vm745 = vweird.f32 %v739
  %vm746 = vweird.f32 %v740
  %vm747 = vmor %vm745, %vm746
  %v748 = vsel %vm747, %v740, %v744
  %v749 = vand.u32 2147483647, %v739
  %vm750 = vcmp.eq.f32.partialorder %v749, 8.507059e+37
  %v751 = vand.u32 %v739, 2147483648
  %v752 = vor.u32 1.1754944e-38, %v751
  %v753 = vsel %vm750, %v752, %v748
  %v754 = vmul.f32 1.0, %v753
  %v755 = vtanh.pop %v735
  %v756 = vmul.f32 %v754, %v630
  %758 = vrot.lane.b32.xlu0 %v755, 64
  %v759 = vpop.permute.xlu0 %758
  %v761 = vmul.f32 %v754, %v759
  %763 = vrot.lane.b32.xlu0 %v761, 32
  %v764 = vpop.permute.xlu0 %763
  %v766 = vadd.f32 %v756, %v764
  %v767 = vtanh.pop %v766
  %769 = vrot.lane.b32.xlu0 %v767, 64
  %v770 = vpop.permute.xlu0 %769
  %v772 = vmul.f32 %v754, %v770
  %774 = vrot.lane.b32.xlu0 %v772, 32
  %v775 = vpop.permute.xlu0 %774
  %777 = vst.msk [vmem:[%s435] sm:$0x3] %vm92, %v775
  %s778 = scalar_lea.vmem %s1, 4
  %v779 = vld [vmem:[%s778] sm:$0x3]
  %780 = vrot.lane.b32.xlu0 %v705, 32
  %v781 = vpop.permute.xlu0 %780
  %v782 = vsel %vm26, %v781, 0
  %784 = vmatpush.msra.mxu0 0.0
  %785 = vmatpush.msra.mxu0 0.0
  %786 = vmatpush.msra.mxu0 0.0
  %787 = vmatpush.msra.mxu0 0.0
  %788 = vmatpush.msra.mxu0 0.0
  %789 = vmatpush.msra.mxu0 0.0
  %790 = vmatpush.msra.mxu0 0.0
  %791 = vmatpush.msra.mxu0 0.0
  %792 = vmatpush.msra.mxu0 0.0
  %793 = vmatpush.msra.mxu0 0.0
  %794 = vmatpush.msra.mxu0 0.0
  %795 = vmatpush.msra.mxu0 0.0
  %796 = vmatpush.msra.mxu0 %v24
  %797 = vmatpush.msra.mxu0 %v23
  %798 = vmatpush.msra.mxu0 %v22
  %799 = vmatpush.msra.mxu0 %v21
  %800 = vmatmul.f32.gmra.mxu0 %v782
  %v801 = vpop.f32.mrf.mxu0
  %v802 = vadd.f32 0.0, %v801
  %803 = vdwg.mxu0
  %v804 = vadd.f32 %v779, %v802
  %v805 = vxor.u32 %v804, 2147483648
  %v806 = vmul.f32 %v805, 1.442695
  %v807 = vpow.pop %v806
  %v808 = vadd.f32 %v807, 1.0
  %v809 = vrcp.pop %v808
  %v810 = vmul.f32 %v808, %v809
  %v811 = vsub.f32 1.0, %v810
  %v812 = vmul.f32 %v809, %v811
  %v813 = vadd.f32 %v809, %v812
  %vm814 = vweird.f32 %v808
  %vm815 = vweird.f32 %v809
  %vm816 = vmor %vm814, %vm815
  %v817 = vsel %vm816, %v809, %v813
  %v818 = vand.u32 2147483647, %v808
  %vm819 = vcmp.eq.f32.partialorder %v818, 8.507059e+37
  %v820 = vand.u32 %v808, 2147483648
  %v821 = vor.u32 1.1754944e-38, %v820
  %v822 = vsel %vm819, %v821, %v817
  %v823 = vmul.f32 1.0, %v822
  %v824 = vtanh.pop %v804
  %v825 = vmul.f32 %v823, %v699
  %827 = vrot.lane.b32.xlu0 %v824, 64
  %v828 = vpop.permute.xlu0 %827
  %v830 = vmul.f32 %v823, %v828
  %832 = vrot.lane.b32.xlu0 %v830, 32
  %v833 = vpop.permute.xlu0 %832
  %v835 = vadd.f32 %v825, %v833
  %v836 = vtanh.pop %v835
  %838 = vrot.lane.b32.xlu0 %v836, 64
  %v839 = vpop.permute.xlu0 %838
  %v841 = vmul.f32 %v823, %v839
  %843 = vrot.lane.b32.xlu0 %v841, 64
  %v844 = vpop.permute.xlu0 %843
  %846 = vst.msk [vmem:[%s365] sm:$0x3] %vm159, %v844
  %s847 = scalar_lea.vmem %s0, 12
  %v848 = vld [vmem:[%s847] sm:$0x3]
  %v849 = vsel %vm26, %v775, 0
  %851 = vmatpush.msra.mxu0 0.0
  %852 = vmatpush.msra.mxu0 0.0
  %853 = vmatpush.msra.mxu0 0.0
  %854 = vmatpush.msra.mxu0 0.0
  %855 = vmatpush.msra.mxu0 0.0
  %856 = vmatpush.msra.mxu0 0.0
  %857 = vmatpush.msra.mxu0 0.0
  %858 = vmatpush.msra.mxu0 0.0
  %859 = vmatpush.msra.mxu0 0.0
  %860 = vmatpush.msra.mxu0 0.0
  %861 = vmatpush.msra.mxu0 0.0
  %862 = vmatpush.msra.mxu0 0.0
  %863 = vmatpush.msra.mxu0 %v20
  %864 = vmatpush.msra.mxu0 %v19
  %865 = vmatpush.msra.mxu0 %v18
  %866 = vmatpush.msra.mxu0 %v17
  %867 = vmatmul.f32.gmra.mxu0 %v849
  %v868 = vpop.f32.mrf.mxu0
  %v869 = vadd.f32 0.0, %v868
  %870 = vdwg.mxu0
  %v871 = vadd.f32 %v848, %v869
  %v872 = vxor.u32 %v871, 2147483648
  %v873 = vmul.f32 %v872, 1.442695
  %v874 = vpow.pop %v873
  %v875 = vadd.f32 %v874, 1.0
  %v876 = vrcp.pop %v875
  %v877 = vmul.f32 %v875, %v876
  %v878 = vsub.f32 1.0, %v877
  %v879 = vmul.f32 %v876, %v878
  %v880 = vadd.f32 %v876, %v879
  %vm881 = vweird.f32 %v875
  %vm882 = vweird.f32 %v876
  %vm883 = vmor %vm881, %vm882
  %v884 = vsel %vm883, %v876, %v880
  %v885 = vand.u32 2147483647, %v875
  %vm886 = vcmp.eq.f32.partialorder %v885, 8.507059e+37
  %v887 = vand.u32 %v875, 2147483648
  %v888 = vor.u32 1.1754944e-38, %v887
  %v889 = vsel %vm886, %v888, %v884
  %v890 = vmul.f32 1.0, %v889
  %v891 = vtanh.pop %v871
  %v892 = vmul.f32 %v890, %v766
  %894 = vrot.lane.b32.xlu0 %v891, 64
  %v895 = vpop.permute.xlu0 %894
  %v897 = vmul.f32 %v890, %v895
  %899 = vrot.lane.b32.xlu0 %v897, 32
  %v900 = vpop.permute.xlu0 %899
  %v902 = vadd.f32 %v892, %v900
  %v903 = vtanh.pop %v902
  %905 = vrot.lane.b32.xlu0 %v903, 64
  %v906 = vpop.permute.xlu0 %905
  %v908 = vmul.f32 %v890, %v906
  %910 = vrot.lane.b32.xlu0 %v908, 32
  %v911 = vpop.permute.xlu0 %910
  %913 = vst.msk [vmem:[%s297] sm:$0x3] %vm92, %v911
  %s914 = scalar_lea.vmem %s1, 2
  %v915 = vld [vmem:[%s914] sm:$0x3]
  %916 = vrot.lane.b32.xlu0 %v841, 32
  %v917 = vpop.permute.xlu0 %916
  %v918 = vsel %vm26, %v917, 0
  %920 = vmatpush.msra.mxu0 0.0
  %921 = vmatpush.msra.mxu0 0.0
  %922 = vmatpush.msra.mxu0 0.0
  %923 = vmatpush.msra.mxu0 0.0
  %924 = vmatpush.msra.mxu0 0.0
  %925 = vmatpush.msra.mxu0 0.0
  %926 = vmatpush.msra.mxu0 0.0
  %927 = vmatpush.msra.mxu0 0.0
  %928 = vmatpush.msra.mxu0 0.0
  %929 = vmatpush.msra.mxu0 0.0
  %930 = vmatpush.msra.mxu0 0.0
  %931 = vmatpush.msra.mxu0 0.0
  %932 = vmatpush.msra.mxu0 %v24
  %933 = vmatpush.msra.mxu0 %v23
  %934 = vmatpush.msra.mxu0 %v22
  %935 = vmatpush.msra.mxu0 %v21
  %936 = vmatmul.f32.gmra.mxu0 %v918
  %v937 = vpop.f32.mrf.mxu0
  %v938 = vadd.f32 0.0, %v937
  %939 = vdwg.mxu0
  %v940 = vadd.f32 %v915, %v938
  %v941 = vxor.u32 %v940, 2147483648
  %v942 = vmul.f32 %v941, 1.442695
  %v943 = vpow.pop %v942
  %v944 = vadd.f32 %v943, 1.0
  %v945 = vrcp.pop %v944
  %v946 = vmul.f32 %v944, %v945
  %v947 = vsub.f32 1.0, %v946
  %v948 = vmul.f32 %v945, %v947
  %v949 = vadd.f32 %v945, %v948
  %vm950 = vweird.f32 %v944
  %vm951 = vweird.f32 %v945
  %vm952 = vmor %vm950, %vm951
  %v953 = vsel %vm952, %v945, %v949
  %v954 = vand.u32 2147483647, %v944
  %vm955 = vcmp.eq.f32.partialorder %v954, 8.507059e+37
  %v956 = vand.u32 %v944, 2147483648
  %v957 = vor.u32 1.1754944e-38, %v956
  %v958 = vsel %vm955, %v957, %v953
  %v959 = vmul.f32 1.0, %v958
  %v960 = vtanh.pop %v940
  %v961 = vmul.f32 %v959, %v835
  %963 = vrot.lane.b32.xlu0 %v960, 64
  %v964 = vpop.permute.xlu0 %963
  %v966 = vmul.f32 %v959, %v964
  %968 = vrot.lane.b32.xlu0 %v966, 32
  %v969 = vpop.permute.xlu0 %968
  %v971 = vadd.f32 %v961, %v969
  %v972 = vtanh.pop %v971
  %974 = vrot.lane.b32.xlu0 %v972, 64
  %v975 = vpop.permute.xlu0 %974
  %v977 = vmul.f32 %v959, %v975
  %979 = vrot.lane.b32.xlu0 %v977, 64
  %v980 = vpop.permute.xlu0 %979
  %982 = vst.msk [vmem:[%s227] sm:$0x3] %vm159, %v980
  %s983 = scalar_lea.vmem %s0, 14
  %v984 = vld [vmem:[%s983] sm:$0x3]
  %v985 = vsel %vm26, %v911, 0
  %987 = vmatpush.msra.mxu0 0.0
  %988 = vmatpush.msra.mxu0 0.0
  %989 = vmatpush.msra.mxu0 0.0
  %990 = vmatpush.msra.mxu0 0.0
  %991 = vmatpush.msra.mxu0 0.0
  %992 = vmatpush.msra.mxu0 0.0
  %993 = vmatpush.msra.mxu0 0.0
  %994 = vmatpush.msra.mxu0 0.0
  %995 = vmatpush.msra.mxu0 0.0
  %996 = vmatpush.msra.mxu0 0.0
  %997 = vmatpush.msra.mxu0 0.0
  %998 = vmatpush.msra.mxu0 0.0
  %999 = vmatpush.msra.mxu0 %v20
  %1000 = vmatpush.msra.mxu0 %v19
  %1001 = vmatpush.msra.mxu0 %v18
  %1002 = vmatpush.msra.mxu0 %v17
  %1003 = vmatmul.f32.gmra.mxu0 %v985
  %v1004 = vpop.f32.mrf.mxu0
  %v1005 = vadd.f32 0.0, %v1004
  %1006 = vdwg.mxu0
  %v1007 = vadd.f32 %v984, %v1005
  %v1008 = vxor.u32 %v1007, 2147483648
  %v1009 = vmul.f32 %v1008, 1.442695
  %v1010 = vpow.pop %v1009
  %v1011 = vadd.f32 %v1010, 1.0
  %v1012 = vrcp.pop %v1011
  %v1013 = vmul.f32 %v1011, %v1012
  %v1014 = vsub.f32 1.0, %v1013
  %v1015 = vmul.f32 %v1012, %v1014
  %v1016 = vadd.f32 %v1012, %v1015
  %vm1017 = vweird.f32 %v1011
  %vm1018 = vweird.f32 %v1012
  %vm1019 = vmor %vm1017, %vm1018
  %v1020 = vsel %vm1019, %v1012, %v1016
  %v1021 = vand.u32 2147483647, %v1011
  %vm1022 = vcmp.eq.f32.partialorder %v1021, 8.507059e+37
  %v1023 = vand.u32 %v1011, 2147483648
  %v1024 = vor.u32 1.1754944e-38, %v1023
  %v1025 = vsel %vm1022, %v1024, %v1020
  %v1026 = vmul.f32 1.0, %v1025
  %v1027 = vtanh.pop %v1007
  %v1028 = vmul.f32 %v1026, %v902
  %1030 = vrot.lane.b32.xlu0 %v1027, 64
  %v1031 = vpop.permute.xlu0 %1030
  %v1033 = vmul.f32 %v1026, %v1031
  %1035 = vrot.lane.b32.xlu0 %v1033, 32
  %v1036 = vpop.permute.xlu0 %1035
  %v1038 = vadd.f32 %v1028, %v1036
  %v1039 = vtanh.pop %v1038
  %1041 = vrot.lane.b32.xlu0 %v1039, 64
  %v1042 = vpop.permute.xlu0 %1041
  %v1044 = vmul.f32 %v1026, %v1042
  %1046 = vrot.lane.b32.xlu0 %v1044, 32
  %v1047 = vpop.permute.xlu0 %1046
  %1049 = vst.msk [vmem:[%s158] sm:$0x3] %vm92, %v1047
  %v1050 = vld [vmem:[%s1] sm:$0x3]
  %1051 = vrot.lane.b32.xlu0 %v977, 32
  %v1052 = vpop.permute.xlu0 %1051
  %v1053 = vsel %vm26, %v1052, 0
  %1055 = vmatpush.msra.mxu0 0.0
  %1056 = vmatpush.msra.mxu0 0.0
  %1057 = vmatpush.msra.mxu0 0.0
  %1058 = vmatpush.msra.mxu0 0.0
  %1059 = vmatpush.msra.mxu0 0.0
  %1060 = vmatpush.msra.mxu0 0.0
  %1061 = vmatpush.msra.mxu0 0.0
  %1062 = vmatpush.msra.mxu0 0.0
  %1063 = vmatpush.msra.mxu0 0.0
  %1064 = vmatpush.msra.mxu0 0.0
  %1065 = vmatpush.msra.mxu0 0.0
  %1066 = vmatpush.msra.mxu0 0.0
  %1067 = vmatpush.msra.mxu0 %v24
  %1068 = vmatpush.msra.mxu0 %v23
  %1069 = vmatpush.msra.mxu0 %v22
  %1070 = vmatpush.msra.mxu0 %v21
  %1071 = vmatmul.f32.gmra.mxu0 %v1053
  %v1072 = vpop.f32.mrf.mxu0
  %v1073 = vadd.f32 0.0, %v1072
  %1074 = vdwg.mxu0
  %v1075 = vadd.f32 %v1050, %v1073
  %v1076 = vxor.u32 %v1075, 2147483648
  %v1077 = vmul.f32 %v1076, 1.442695
  %v1078 = vpow.pop %v1077
  %v1079 = vadd.f32 %v1078, 1.0
  %v1080 = vrcp.pop %v1079
  %v1081 = vmul.f32 %v1079, %v1080
  %v1082 = vsub.f32 1.0, %v1081
  %v1083 = vmul.f32 %v1080, %v1082
  %v1084 = vadd.f32 %v1080, %v1083
  %vm1085 = vweird.f32 %v1079
  %vm1086 = vweird.f32 %v1080
  %vm1087 = vmor %vm1085, %vm1086
  %v1088 = vsel %vm1087, %v1080, %v1084
  %v1089 = vand.u32 2147483647, %v1079
  %vm1090 = vcmp.eq.f32.partialorder %v1089, 8.507059e+37
  %v1091 = vand.u32 %v1079, 2147483648
  %v1092 = vor.u32 1.1754944e-38, %v1091
  %v1093 = vsel %vm1090, %v1092, %v1088
  %v1094 = vmul.f32 1.0, %v1093
  %v1095 = vtanh.pop %v1075
  %v1096 = vmul.f32 %v1094, %v971
  %1098 = vrot.lane.b32.xlu0 %v1095, 64
  %v1099 = vpop.permute.xlu0 %1098
  %v1101 = vmul.f32 %v1094, %v1099
  %1103 = vrot.lane.b32.xlu0 %v1101, 32
  %v1104 = vpop.permute.xlu0 %1103
  %v1106 = vadd.f32 %v1096, %v1104
  %v1107 = vtanh.pop %v1106
  %1109 = vrot.lane.b32.xlu0 %v1107, 64
  %v1110 = vpop.permute.xlu0 %1109
  %v1112 = vmul.f32 %v1094, %v1110
  %1114 = vrot.lane.b32.xlu0 %v1112, 64
  %v1115 = vpop.permute.xlu0 %1114
  %1117 = vst.msk [vmem:[%s4] sm:$0x3] %vm159, %v1115
  // Predicated region
  $region18: #{sentence_classifier_forward.2} parent=0 // pred_check
    _
  $region19: #{sentence_classifier_forward.2} parent=0 // pred_check_branch
    %1119 = sbr.rel (0) target = $region21
  $region20: #{sentence_classifier_forward.2} parent=0 // pred_region
    _
  $region21: #{sentence_classifier_forward.2} parent=0 // pred_fallthru
    _
  // Predicated region
  $region22: #{sentence_classifier_forward.2} parent=0 // pred_check
    _
  $region23: #{sentence_classifier_forward.2} parent=0 // pred_check_branch
    %1121 = sbr.rel (0) target = $region25
  $region24: #{sentence_classifier_forward.2} parent=0 // pred_region
    _
  $region25: #{sentence_classifier_forward.2} parent=0 // pred_fallthru
    _

</llo_original>
